<compile_context>
chip_gen: v6e
topology: v6e:2x2x1
jax: 0.10.0
libtpu: 0.0.40
codegen_flags: <defaults>
</compile_context>

<pallas_src>
import jax
import jax.numpy as jnp
import numpy as np
from jax import lax
from jax.experimental import pallas as pl
from jax.experimental.pallas import tpu as pltpu


_LANE = 128
_SUBLANE = 8
_CHUNK_ELEMS = 32 * 1024     # per-chunk f32 elements (~128 KiB ~= 32 vregs), stays in registers


def _round_up(x, m):
    return ((x + m - 1) // m) * m


def _pow2_floor(x):
    return 1 << (int(x).bit_length() - 1)


def _pick_ec(ep):
    """Largest multiple of 128 that divides ep and is <= 512."""
    k = ep // _LANE
    for d in (4, 3, 2, 1):
        if k % d == 0:
            return _LANE * d
    return _LANE


def _generation_params():
    """(vmem_limit_bytes, target_memory_block_bytes), generation dependent."""
    vmem_cap = 64 * 1024 * 1024          # conservative (v7x-safe) fallback
    try:
        vmem_cap = int(pltpu.get_tpu_info().vmem_capacity_bytes)
    except Exception:
        pass
    if vmem_cap >= 100 * 1024 * 1024:    # v5e / v6e class: 128 MiB VMEM
        return 100 * 1024 * 1024, 8 * 1024 * 1024
    # v7x class: 64 MiB per TensorCore; leave Mosaic scratch headroom
    return min(52 * 1024 * 1024, int(vmem_cap * 0.8)), 6 * 1024 * 1024


def _make_kernel(NB, TB, EC, TC, n_tc, n_ec, nT):
    """Kernel over grid (batch_blocks, T_blocks); j (T) is the inner/arbitrary axis."""

    def kernel(mem_ref, proj_ref, bias_ref, ctx_ref, align_ref,
               m_sc, l_sc, acc_sc, sp_sc, raw_sc):
        j = pl.program_id(1)

        @pl.when(j == 0)
        def _init():
            m_sc[...] = jnp.full(m_sc.shape, -jnp.inf, dtype=m_sc.dtype)
            l_sc[...] = jnp.zeros(l_sc.shape, dtype=l_sc.dtype)
            acc_sc[...] = jnp.zeros(acc_sc.shape, dtype=acc_sc.dtype)

        # ---- phase 1: raw scores s[b,t] = sum_e mem[b,t,e] * proj[b,e] ----
        # Chunked so the (NB, TC, EC) product stays in vregs (no block-sized VMEM temp).
        for tc in range(n_tc):
            t0 = tc * TC
            s_part = jnp.zeros((NB, TC), dtype=jnp.float32)
            for ec in range(n_ec):
                e0 = ec * EC
                mem_c = mem_ref[:, t0:t0 + TC, e0:e0 + EC]        # (NB, TC, EC)
                prj_c = proj_ref[:, e0:e0 + EC]                   # (NB, EC)
                s_part = s_part + jnp.sum(mem_c * prj_c[:, None, :], axis=2)
            sp_sc[:, t0:t0 + TC] = s_part

        s_tile = sp_sc[...] + bias_ref[...]                       # masked raw scores (NB, TB)
        raw_sc[j] = s_tile                                        # parked for the finalize pass

        # ---- online softmax across T tiles ----
        m_prev = m_sc[...]                                        # (NB, 1)
        m_new = jnp.maximum(m_prev, jnp.max(s_tile, axis=-1, keepdims=True))
        alpha = jnp.exp(m_prev - m_new)
        p_tile = jnp.exp(s_tile - m_new)                          # (NB, TB)
        sp_sc[...] = p_tile                                       # reuse scratch for the probs
        l_sc[...] = alpha * l_sc[...] + jnp.sum(p_tile, axis=-1, keepdims=True)
        m_sc[...] = m_new

        # ---- phase 2: ctx accumulation acc[b,e] += sum_t p[b,t] * mem[b,t,e] ----
        for ec in range(n_ec):
            e0 = ec * EC
            acc_e = jnp.zeros((NB, EC), dtype=jnp.float32)
            for tc in range(n_tc):
                t0 = tc * TC
                p_c = sp_sc[:, t0:t0 + TC]                        # (NB, TC)
                mem_c = mem_ref[:, t0:t0 + TC, e0:e0 + EC]        # (NB, TC, EC)
                acc_e = acc_e + jnp.sum(p_c[:, :, None] * mem_c, axis=1)
            acc_sc[:, e0:e0 + EC] = alpha * acc_sc[:, e0:e0 + EC] + acc_e

        # ---- finalize on the last T tile ----
        @pl.when(j == pl.num_programs(1) - 1)
        def _finalize():
            rinv = pl.reciprocal(l_sc[...], approx=False)         # EUP slot, exact enough
            ctx_ref[...] = (acc_sc[...] * rinv).astype(ctx_ref.dtype)
            m_fin = m_sc[...]
            for jj in range(nT):                                  # static offsets, lane-dense
                align_ref[:, jj * TB:(jj + 1) * TB] = (
                    jnp.exp(raw_sc[jj] - m_fin) * rinv).astype(align_ref.dtype)

    return kernel


def luong_attention(memory, weight, queries, lengths=None, *, target_block_bytes=None):
    """memory [N,T,E] f32, weight [D,E] f32 (nn.Linear(E,D).weight layout),
    queries [N,1,D] f32, lengths optional int32 [N].
    Returns (contexts [N,E], alignments [N,T])."""
    memory = jnp.asarray(memory, jnp.float32)
    weight = jnp.asarray(weight, jnp.float32)
    queries = jnp.asarray(queries, jnp.float32)
    N, T, E = memory.shape
    q2 = queries[:, 0, :] if queries.ndim == 3 else queries
    D = q2.shape[-1]
    assert weight.shape == (D, E)

    vmem_limit, default_block = _generation_params()
    if target_block_bytes is None:
        target_block_bytes = default_block

    # Hoisted query projection: one real (N, D) @ (D, E) matmul in XLA.
    # scores[n, t] = sum_e mem[n,t,e] * proj[n,e]  ==  (mem @ W.T) @ q
    proj = jnp.dot(q2, weight, preferred_element_type=jnp.float32,
                   precision=lax.Precision.HIGHEST)               # (N, E)

    Ep = _round_up(E, _LANE)
    Tp = _round_up(T, _LANE)
    NB = _SUBLANE                                                  # 8 batch rows per block
    Np = _round_up(N, NB)

    # T tile sized so the streamed (NB, TB, Ep) block hits the generation target.
    row_bytes = NB * Ep * 4
    TB = min(Tp, max(_LANE, (target_block_bytes // row_bytes) // _LANE * _LANE))
    Tpad = _round_up(Tp, TB)
    nT = Tpad // TB

    # In-kernel chunk sizes: per-chunk product (NB, TC, EC) <= _CHUNK_ELEMS f32.
    EC = _pick_ec(Ep)
    TC = max(8, min(128, _pow2_floor(max(1, _CHUNK_ELEMS // (NB * EC)))))
    n_tc, n_ec = TB // TC, Ep // EC

    mem_p = memory
    if (Np, Tpad, Ep) != (N, T, E):
        mem_p = jnp.pad(mem_p, ((0, Np - N), (0, Tpad - T), (0, Ep - E)))
    proj_p = proj
    if (Np, Ep) != (N, E):
        proj_p = jnp.pad(proj_p, ((0, Np - N), (0, Ep - E)))

    # Additive length mask (mirrors set_memory); also masks T padding.
    # Padded batch rows stay unmasked over zero memory -> uniform softmax, no NaN.
    if lengths is None:
        eff = jnp.full((N,), T, dtype=jnp.int32)
    else:
        eff = jnp.minimum(jnp.asarray(lengths, jnp.int32), T)
    if Np > N:
        eff = jnp.concatenate([eff, jnp.full((Np - N,), Tpad, dtype=jnp.int32)])
    t_idx = jnp.arange(Tpad, dtype=jnp.int32)
    bias = jnp.where(t_idx[None, :] < eff[:, None], 0.0, -jnp.inf).astype(jnp.float32)

    cost = pl.CostEstimate(
        flops=int(4 * Np * Tpad * Ep + 8 * Np * Tpad),
        transcendentals=int(2 * Np * Tpad),
        bytes_accessed=int(4 * (Np * Tpad * Ep + 2 * Np * Ep + 3 * Np * Tpad)),
    )

    kernel = _make_kernel(NB, TB, EC, TC, n_tc, n_ec, nT)

    ctx_p, align_p = pl.pallas_call(
        kernel,
        out_shape=(
            jax.ShapeDtypeStruct((Np, Ep), jnp.float32),
            jax.ShapeDtypeStruct((Np, Tpad), jnp.float32),
        ),
        grid_spec=pltpu.PrefetchScalarGridSpec(
            num_scalar_prefetch=0,
            grid=(Np // NB, nT),
            in_specs=[
                pl.BlockSpec((NB, TB, Ep), lambda i, j: (i, j, 0)),    # memory tile (streamed)
                pl.BlockSpec((NB, Ep), lambda i, j: (i, 0)),           # projected queries
                pl.BlockSpec((NB, TB), lambda i, j: (i, j)),           # additive mask bias
            ],
            out_specs=(
                pl.BlockSpec((NB, Ep), lambda i, j: (i, 0)),           # contexts
                pl.BlockSpec((NB, Tpad), lambda i, j: (i, 0)),         # alignments (resident)
            ),
            scratch_shapes=[
                pltpu.VMEM((NB, 1), jnp.float32),        # running max
                pltpu.VMEM((NB, 1), jnp.float32),        # running denominator
                pltpu.VMEM((NB, Ep), jnp.float32),       # ctx accumulator
                pltpu.VMEM((NB, TB), jnp.float32),       # per-tile scores / probs
                pltpu.VMEM((nT, NB, TB), jnp.float32),   # raw scores of every T tile
            ],
        ),
        compiler_params=pltpu.CompilerParams(
            dimension_semantics=("parallel", "arbitrary"),
            vmem_limit_bytes=vmem_limit,
        ),
        cost_estimate=cost,
    )(mem_p, proj_p, bias)

    # strip batch / lane padding (matches the PyTorch squeeze semantics)
    return ctx_p[:N, :E], align_p[:N, :T]


def _reference(memory, weight, queries, lengths=None):
    # pure-JAX reference mirroring the PyTorch module
    hp = lax.Precision.HIGHEST
    keys = jnp.einsum("nte,de->ntd", memory, weight, precision=hp)     # va(memory)
    w = jnp.einsum("ntd,nd->nt", keys, queries[:, 0, :], precision=hp)
    if lengths is not None:
        T = memory.shape[1]
        mask = jnp.arange(T)[None, :] >= lengths[:, None]
        w = jnp.where(mask, -jnp.inf, w)
    align = jax.nn.softmax(w, axis=-1)
    ctx = jnp.einsum("nt,nte->ne", align, memory, precision=hp)
    return ctx, align


if __name__ == "__main__":
    # --- test 1: small single-tile case (batch=2, enc_time=8, encoder=32, decoder=16) ---
    N, T, E, D = 2, 8, 32, 16
    key = jax.random.PRNGKey(0)
    k_mem, k_w, k_q = jax.random.split(key, 3)
    memory = jax.random.normal(k_mem, (N, T, E), dtype=jnp.float32)
    weight = jax.random.normal(k_w, (D, E), dtype=jnp.float32) * (1.0 / np.sqrt(E))
    queries = jax.random.normal(k_q, (N, 1, D), dtype=jnp.float32)
    lengths = jnp.array([T, 5], dtype=jnp.int32)           # exercise the masking path

    ctx, align = luong_attention(memory, weight, queries, lengths)
    jax.block_until_ready((ctx, align))

    ctx_ref, align_ref = _reference(memory, weight, queries, lengths)
    np.testing.assert_allclose(np.asarray(ctx), np.asarray(ctx_ref), rtol=1e-5, atol=1e-5)
    np.testing.assert_allclose(np.asarray(align), np.asarray(align_ref), rtol=1e-5, atol=1e-5)

    # --- test 2: multi batch-block + multi T-tile (online softmax) path, still small ---
    N2, T2, E2, D2 = 12, 200, 96, 48
    k_mem2, k_w2, k_q2 = jax.random.split(jax.random.PRNGKey(1), 3)
    memory2 = jax.random.normal(k_mem2, (N2, T2, E2), dtype=jnp.float32)
    weight2 = jax.random.normal(k_w2, (D2, E2), dtype=jnp.float32) * (1.0 / np.sqrt(E2))
    queries2 = jax.random.normal(k_q2, (N2, 1, D2), dtype=jnp.float32)
    lengths2 = jnp.array([200, 128, 64, 130, 7, 199, 100, 150, 1, 180, 90, 110],
                         dtype=jnp.int32)
    # force a small streaming block so the T grid has >1 tile (exercises the flash path)
    ctx2, align2 = luong_attention(memory2, weight2, queries2, lengths2,
                                   target_block_bytes=512 * 1024)
    jax.block_until_ready((ctx2, align2))
    ctx2_ref, align2_ref = _reference(memory2, weight2, queries2, lengths2)
    np.testing.assert_allclose(np.asarray(ctx2), np.asarray(ctx2_ref), rtol=1e-4, atol=1e-5)
    np.testing.assert_allclose(np.asarray(align2), np.asarray(align2_ref), rtol=1e-4, atol=1e-5)

    print("KERNEL_OK")
</pallas_src>

<mosaic_0001>
module attributes {stable_mosaic.version = 11 : i64} {
  func.func @kernel(%arg0: i32, %arg1: i32, %arg2: memref<8x128x128xf32, #tpu.memory_space<vmem>>, %arg3: memref<8x128xf32, #tpu.memory_space<vmem>>, %arg4: memref<8x128xf32, #tpu.memory_space<vmem>>, %arg5: memref<8x128xf32, #tpu.memory_space<vmem>>, %arg6: memref<8x128xf32, #tpu.memory_space<vmem>>, %arg7: memref<8x1xf32, #tpu.memory_space<vmem>>, %arg8: memref<8x1xf32, #tpu.memory_space<vmem>>, %arg9: memref<8x128xf32, #tpu.memory_space<vmem>>, %arg10: memref<8x128xf32, #tpu.memory_space<vmem>>, %arg11: memref<1x8x128xf32, #tpu.memory_space<vmem>>) attributes {dimension_semantics = [#tpu.dimension_semantics<parallel>, #tpu.dimension_semantics<arbitrary>], iteration_bounds = array<i64: 1, 1>, scalar_prefetch = 0 : i64, scratch_operands = 5 : i64, tpu.core_type = #tpu.core_type<tc>, window_params = [{transform_indices = @transform_0, window_bounds = array<i64: 8, 128, 128>}, {transform_indices = @transform_1, window_bounds = array<i64: 8, 128>}, {transform_indices = @transform_2, window_bounds = array<i64: 8, 128>}, {transform_indices = @transform_3, window_bounds = array<i64: 8, 128>}, {transform_indices = @transform_4, window_bounds = array<i64: 8, 128>}]} {
    %c0_i32 = arith.constant 0 : i32
    %0 = arith.cmpi eq, %arg1, %c0_i32 : i32
    %1 = arith.extui %0 : i1 to i32
    %c0_i32_0 = arith.constant 0 : i32
    %2 = arith.cmpi ne, %1, %c0_i32_0 : i32
    scf.if %2 {
      %cst_81 = arith.constant 0xFF800000 : f32
      %100 = vector.broadcast %cst_81 : f32 to vector<8x1xf32>
      %c0_82 = arith.constant 0 : index
      %c0_83 = arith.constant 0 : index
      %101 = vector.load %arg7[%c0_82, %c0_83] : memref<8x1xf32, #tpu.memory_space<vmem>>, vector<8x1xf32>
      tpu.vector_store %arg7[%c0_82, %c0_83], %100 {strides = array<i32>} : memref<8x1xf32, #tpu.memory_space<vmem>>, vector<8x1xf32>,
      %cst_84 = arith.constant 0.000000e+00 : f32
      %102 = vector.broadcast %cst_84 : f32 to vector<8x1xf32>
      %c0_85 = arith.constant 0 : index
      %c0_86 = arith.constant 0 : index
      %103 = vector.load %arg8[%c0_85, %c0_86] : memref<8x1xf32, #tpu.memory_space<vmem>>, vector<8x1xf32>
      tpu.vector_store %arg8[%c0_85, %c0_86], %102 {strides = array<i32>} : memref<8x1xf32, #tpu.memory_space<vmem>>, vector<8x1xf32>,
      %cst_87 = arith.constant 0.000000e+00 : f32
      %104 = vector.broadcast %cst_87 : f32 to vector<8x128xf32>
      %c0_88 = arith.constant 0 : index
      %c0_89 = arith.constant 0 : index
      %105 = vector.load %arg9[%c0_88, %c0_89] : memref<8x128xf32, #tpu.memory_space<vmem>>, vector<8x128xf32>
      tpu.vector_store %arg9[%c0_88, %c0_89], %104 {strides = array<i32>} : memref<8x128xf32, #tpu.memory_space<vmem>>, vector<8x128xf32>,
    } else {
    }
    %cst = arith.constant 0.000000e+00 : f32
    %3 = vector.broadcast %cst : f32 to vector<8x32xf32>
    %c0 = arith.constant 0 : index
    %c0_1 = arith.constant 0 : index
    %c0_2 = arith.constant 0 : index
    %4 = vector.load %arg2[%c0, %c0_1, %c0_2] : memref<8x128x128xf32, #tpu.memory_space<vmem>>, vector<8x32x128xf32>
    %c0_3 = arith.constant 0 : index
    %c0_4 = arith.constant 0 : index
    %5 = vector.load %arg3[%c0_3, %c0_4] : memref<8x128xf32, #tpu.memory_space<vmem>>, vector<8x128xf32>
    %6 = vector.shape_cast %5 : vector<8x128xf32> to vector<8x1x128xf32>
    %7 = vector.broadcast %6 : vector<8x1x128xf32> to vector<8x32x128xf32>
    %8 = arith.mulf %4, %7 : vector<8x32x128xf32>
    %cst_5 = arith.constant dense<0.000000e+00> : vector<8x32xf32>
    %9 = vector.multi_reduction <add>, %8, %cst_5 [2] : vector<8x32x128xf32> to vector<8x32xf32>
    %10 = arith.addf %3, %9 : vector<8x32xf32>
    %c0_6 = arith.constant 0 : index
    %c0_7 = arith.constant 0 : index
    %11 = vector.load %arg10[%c0_6, %c0_7] : memref<8x128xf32, #tpu.memory_space<vmem>>, vector<8x32xf32>
    tpu.vector_store %arg10[%c0_6, %c0_7], %10 {strides = array<i32>} : memref<8x128xf32, #tpu.memory_space<vmem>>, vector<8x32xf32>,
    %cst_8 = arith.constant 0.000000e+00 : f32
    %12 = vector.broadcast %cst_8 : f32 to vector<8x32xf32>
    %c0_9 = arith.constant 0 : index
    %c32 = arith.constant 32 : index
    %c0_10 = arith.constant 0 : index
    %13 = vector.load %arg2[%c0_9, %c32, %c0_10] : memref<8x128x128xf32, #tpu.memory_space<vmem>>, vector<8x32x128xf32>
    %c0_11 = arith.constant 0 : index
    %c0_12 = arith.constant 0 : index
    %14 = vector.load %arg3[%c0_11, %c0_12] : memref<8x128xf32, #tpu.memory_space<vmem>>, vector<8x128xf32>
    %15 = vector.shape_cast %14 : vector<8x128xf32> to vector<8x1x128xf32>
    %16 = vector.broadcast %15 : vector<8x1x128xf32> to vector<8x32x128xf32>
    %17 = arith.mulf %13, %16 : vector<8x32x128xf32>
    %cst_13 = arith.constant dense<0.000000e+00> : vector<8x32xf32>
    %18 = vector.multi_reduction <add>, %17, %cst_13 [2] : vector<8x32x128xf32> to vector<8x32xf32>
    %19 = arith.addf %12, %18 : vector<8x32xf32>
    %c0_14 = arith.constant 0 : index
    %c32_15 = arith.constant 32 : index
    %20 = vector.load %arg10[%c0_14, %c32_15] : memref<8x128xf32, #tpu.memory_space<vmem>>, vector<8x32xf32>
    tpu.vector_store %arg10[%c0_14, %c32_15], %19 {strides = array<i32>} : memref<8x128xf32, #tpu.memory_space<vmem>>, vector<8x32xf32>,
    %cst_16 = arith.constant 0.000000e+00 : f32
    %21 = vector.broadcast %cst_16 : f32 to vector<8x32xf32>
    %c0_17 = arith.constant 0 : index
    %c64 = arith.constant 64 : index
    %c0_18 = arith.constant 0 : index
    %22 = vector.load %arg2[%c0_17, %c64, %c0_18] : memref<8x128x128xf32, #tpu.memory_space<vmem>>, vector<8x32x128xf32>
    %c0_19 = arith.constant 0 : index
    %c0_20 = arith.constant 0 : index
    %23 = vector.load %arg3[%c0_19, %c0_20] : memref<8x128xf32, #tpu.memory_space<vmem>>, vector<8x128xf32>
    %24 = vector.shape_cast %23 : vector<8x128xf32> to vector<8x1x128xf32>
    %25 = vector.broadcast %24 : vector<8x1x128xf32> to vector<8x32x128xf32>
    %26 = arith.mulf %22, %25 : vector<8x32x128xf32>
    %cst_21 = arith.constant dense<0.000000e+00> : vector<8x32xf32>
    %27 = vector.multi_reduction <add>, %26, %cst_21 [2] : vector<8x32x128xf32> to vector<8x32xf32>
    %28 = arith.addf %21, %27 : vector<8x32xf32>
    %c0_22 = arith.constant 0 : index
    %c64_23 = arith.constant 64 : index
    %29 = vector.load %arg10[%c0_22, %c64_23] : memref<8x128xf32, #tpu.memory_space<vmem>>, vector<8x32xf32>
    tpu.vector_store %arg10[%c0_22, %c64_23], %28 {strides = array<i32>} : memref<8x128xf32, #tpu.memory_space<vmem>>, vector<8x32xf32>,
    %cst_24 = arith.constant 0.000000e+00 : f32
    %30 = vector.broadcast %cst_24 : f32 to vector<8x32xf32>
    %c0_25 = arith.constant 0 : index
    %c96 = arith.constant 96 : index
    %c0_26 = arith.constant 0 : index
    %31 = vector.load %arg2[%c0_25, %c96, %c0_26] : memref<8x128x128xf32, #tpu.memory_space<vmem>>, vector<8x32x128xf32>
    %c0_27 = arith.constant 0 : index
    %c0_28 = arith.constant 0 : index
    %32 = vector.load %arg3[%c0_27, %c0_28] : memref<8x128xf32, #tpu.memory_space<vmem>>, vector<8x128xf32>
    %33 = vector.shape_cast %32 : vector<8x128xf32> to vector<8x1x128xf32>
    %34 = vector.broadcast %33 : vector<8x1x128xf32> to vector<8x32x128xf32>
    %35 = arith.mulf %31, %34 : vector<8x32x128xf32>
    %cst_29 = arith.constant dense<0.000000e+00> : vector<8x32xf32>
    %36 = vector.multi_reduction <add>, %35, %cst_29 [2] : vector<8x32x128xf32> to vector<8x32xf32>
    %37 = arith.addf %30, %36 : vector<8x32xf32>
    %c0_30 = arith.constant 0 : index
    %c96_31 = arith.constant 96 : index
    %38 = vector.load %arg10[%c0_30, %c96_31] : memref<8x128xf32, #tpu.memory_space<vmem>>, vector<8x32xf32>
    tpu.vector_store %arg10[%c0_30, %c96_31], %37 {strides = array<i32>} : memref<8x128xf32, #tpu.memory_space<vmem>>, vector<8x32xf32>,
    %c0_32 = arith.constant 0 : index
    %c0_33 = arith.constant 0 : index
    %39 = vector.load %arg10[%c0_32, %c0_33] : memref<8x128xf32, #tpu.memory_space<vmem>>, vector<8x128xf32>
    %c0_34 = arith.constant 0 : index
    %c0_35 = arith.constant 0 : index
    %40 = vector.load %arg4[%c0_34, %c0_35] : memref<8x128xf32, #tpu.memory_space<vmem>>, vector<8x128xf32>
    %41 = arith.addf %39, %40 : vector<8x128xf32>
    %42 = arith.index_cast %arg1 : i32 to index
    %c0_36 = arith.constant 0 : index
    %c0_37 = arith.constant 0 : index
    %43 = vector.load %arg11[%42, %c0_36, %c0_37] : memref<1x8x128xf32, #tpu.memory_space<vmem>>, vector<1x8x128xf32>
    %44 = vector.shape_cast %43 : vector<1x8x128xf32> to vector<8x128xf32>
    %45 = vector.shape_cast %41 : vector<8x128xf32> to vector<1x8x128xf32>
    tpu.vector_store %arg11[%42, %c0_36, %c0_37], %45 {strides = array<i32>} : memref<1x8x128xf32, #tpu.memory_space<vmem>>, vector<1x8x128xf32>,
    %c0_38 = arith.constant 0 : index
    %c0_39 = arith.constant 0 : index
    %46 = vector.load %arg7[%c0_38, %c0_39] : memref<8x1xf32, #tpu.memory_space<vmem>>, vector<8x1xf32>
    %cst_40 = arith.constant dense<0xFF800000> : vector<8xf32>
    %47 = vector.multi_reduction <maximumf>, %41, %cst_40 [1] : vector<8x128xf32> to vector<8xf32>
    %48 = vector.shape_cast %47 : vector<8xf32> to vector<8x1xf32>
    %49 = arith.maximumf %46, %48 : vector<8x1xf32>
    %50 = arith.subf %46, %49 : vector<8x1xf32>
    %51 = math.exp %50 : vector<8x1xf32>
    %52 = vector.broadcast %49 : vector<8x1xf32> to vector<8x128xf32>
    %53 = arith.subf %41, %52 : vector<8x128xf32>
    %54 = math.exp %53 : vector<8x128xf32>
    %c0_41 = arith.constant 0 : index
    %c0_42 = arith.constant 0 : index
    %55 = vector.load %arg10[%c0_41, %c0_42] : memref<8x128xf32, #tpu.memory_space<vmem>>, vector<8x128xf32>
    tpu.vector_store %arg10[%c0_41, %c0_42], %54 {strides = array<i32>} : memref<8x128xf32, #tpu.memory_space<vmem>>, vector<8x128xf32>,
    %c0_43 = arith.constant 0 : index
    %c0_44 = arith.constant 0 : index
    %56 = vector.load %arg8[%c0_43, %c0_44] : memref<8x1xf32, #tpu.memory_space<vmem>>, vector<8x1xf32>
    %57 = arith.mulf %51, %56 : vector<8x1xf32>
    %cst_45 = arith.constant dense<0.000000e+00> : vector<8xf32>
    %58 = vector.multi_reduction <add>, %54, %cst_45 [1] : vector<8x128xf32> to vector<8xf32>
    %59 = vector.shape_cast %58 : vector<8xf32> to vector<8x1xf32>
    %60 = arith.addf %57, %59 : vector<8x1xf32>
    %c0_46 = arith.constant 0 : index
    %c0_47 = arith.constant 0 : index
    %61 = vector.load %arg8[%c0_46, %c0_47] : memref<8x1xf32, #tpu.memory_space<vmem>>, vector<8x1xf32>
    tpu.vector_store %arg8[%c0_46, %c0_47], %60 {strides = array<i32>} : memref<8x1xf32, #tpu.memory_space<vmem>>, vector<8x1xf32>,
    %c0_48 = arith.constant 0 : index
    %c0_49 = arith.constant 0 : index
    %62 = vector.load %arg7[%c0_48, %c0_49] : memref<8x1xf32, #tpu.memory_space<vmem>>, vector<8x1xf32>
    tpu.vector_store %arg7[%c0_48, %c0_49], %49 {strides = array<i32>} : memref<8x1xf32, #tpu.memory_space<vmem>>, vector<8x1xf32>,
    %cst_50 = arith.constant 0.000000e+00 : f32
    %63 = vector.broadcast %cst_50 : f32 to vector<8x128xf32>
    %c0_51 = arith.constant 0 : index
    %c0_52 = arith.constant 0 : index
    %64 = vector.load %arg10[%c0_51, %c0_52] : memref<8x128xf32, #tpu.memory_space<vmem>>, vector<8x32xf32>
    %c0_53 = arith.constant 0 : index
    %c0_54 = arith.constant 0 : index
    %c0_55 = arith.constant 0 : index
    %65 = vector.load %arg2[%c0_53, %c0_54, %c0_55] : memref<8x128x128xf32, #tpu.memory_space<vmem>>, vector<8x32x128xf32>
    %66 = vector.shape_cast %64 : vector<8x32xf32> to vector<8x32x1xf32>
    %67 = vector.broadcast %66 : vector<8x32x1xf32> to vector<8x32x128xf32>
    %68 = arith.mulf %67, %65 : vector<8x32x128xf32>
    %cst_56 = arith.constant dense<0.000000e+00> : vector<8x128xf32>
    %69 = vector.multi_reduction <add>, %68, %cst_56 [1] : vector<8x32x128xf32> to vector<8x128xf32>
    %70 = arith.addf %63, %69 : vector<8x128xf32>
    %c0_57 = arith.constant 0 : index
    %c32_58 = arith.constant 32 : index
    %71 = vector.load %arg10[%c0_57, %c32_58] : memref<8x128xf32, #tpu.memory_space<vmem>>, vector<8x32xf32>
    %c0_59 = arith.constant 0 : index
    %c32_60 = arith.constant 32 : index
    %c0_61 = arith.constant 0 : index
    %72 = vector.load %arg2[%c0_59, %c32_60, %c0_61] : memref<8x128x128xf32, #tpu.memory_space<vmem>>, vector<8x32x128xf32>
    %73 = vector.shape_cast %71 : vector<8x32xf32> to vector<8x32x1xf32>
    %74 = vector.broadcast %73 : vector<8x32x1xf32> to vector<8x32x128xf32>
    %75 = arith.mulf %74, %72 : vector<8x32x128xf32>
    %cst_62 = arith.constant dense<0.000000e+00> : vector<8x128xf32>
    %76 = vector.multi_reduction <add>, %75, %cst_62 [1] : vector<8x32x128xf32> to vector<8x128xf32>
    %77 = arith.addf %70, %76 : vector<8x128xf32>
    %c0_63 = arith.constant 0 : index
    %c64_64 = arith.constant 64 : index
    %78 = vector.load %arg10[%c0_63, %c64_64] : memref<8x128xf32, #tpu.memory_space<vmem>>, vector<8x32xf32>
    %c0_65 = arith.constant 0 : index
    %c64_66 = arith.constant 64 : index
    %c0_67 = arith.constant 0 : index
    %79 = vector.load %arg2[%c0_65, %c64_66, %c0_67] : memref<8x128x128xf32, #tpu.memory_space<vmem>>, vector<8x32x128xf32>
    %80 = vector.shape_cast %78 : vector<8x32xf32> to vector<8x32x1xf32>
    %81 = vector.broadcast %80 : vector<8x32x1xf32> to vector<8x32x128xf32>
    %82 = arith.mulf %81, %79 : vector<8x32x128xf32>
    %cst_68 = arith.constant dense<0.000000e+00> : vector<8x128xf32>
    %83 = vector.multi_reduction <add>, %82, %cst_68 [1] : vector<8x32x128xf32> to vector<8x128xf32>
    %84 = arith.addf %77, %83 : vector<8x128xf32>
    %c0_69 = arith.constant 0 : index
    %c96_70 = arith.constant 96 : index
    %85 = vector.load %arg10[%c0_69, %c96_70] : memref<8x128xf32, #tpu.memory_space<vmem>>, vector<8x32xf32>
    %c0_71 = arith.constant 0 : index
    %c96_72 = arith.constant 96 : index
    %c0_73 = arith.constant 0 : index
    %86 = vector.load %arg2[%c0_71, %c96_72, %c0_73] : memref<8x128x128xf32, #tpu.memory_space<vmem>>, vector<8x32x128xf32>
    %87 = vector.shape_cast %85 : vector<8x32xf32> to vector<8x32x1xf32>
    %88 = vector.broadcast %87 : vector<8x32x1xf32> to vector<8x32x128xf32>
    %89 = arith.mulf %88, %86 : vector<8x32x128xf32>
    %cst_74 = arith.constant dense<0.000000e+00> : vector<8x128xf32>
    %90 = vector.multi_reduction <add>, %89, %cst_74 [1] : vector<8x32x128xf32> to vector<8x128xf32>
    %91 = arith.addf %84, %90 : vector<8x128xf32>
    %c0_75 = arith.constant 0 : index
    %c0_76 = arith.constant 0 : index
    %92 = vector.load %arg9[%c0_75, %c0_76] : memref<8x128xf32, #tpu.memory_space<vmem>>, vector<8x128xf32>
    %93 = vector.broadcast %51 : vector<8x1xf32> to vector<8x128xf32>
    %94 = arith.mulf %93, %92 : vector<8x128xf32>
    %95 = arith.addf %94, %91 : vector<8x128xf32>
    %c0_77 = arith.constant 0 : index
    %c0_78 = arith.constant 0 : index
    %96 = vector.load %arg9[%c0_77, %c0_78] : memref<8x128xf32, #tpu.memory_space<vmem>>, vector<8x128xf32>
    tpu.vector_store %arg9[%c0_77, %c0_78], %95 {strides = array<i32>} : memref<8x128xf32, #tpu.memory_space<vmem>>, vector<8x128xf32>,
    %c0_i32_79 = arith.constant 0 : i32
    %97 = arith.cmpi eq, %arg1, %c0_i32_79 : i32
    %98 = arith.extui %97 : i1 to i32
    %c0_i32_80 = arith.constant 0 : i32
    %99 = arith.cmpi ne, %98, %c0_i32_80 : i32
    scf.if %99 {
      %c0_81 = arith.constant 0 : index
      %c0_82 = arith.constant 0 : index
      %100 = vector.load %arg8[%c0_81, %c0_82] : memref<8x1xf32, #tpu.memory_space<vmem>>, vector<8x1xf32>
      %101 = tpu.reciprocal %100 : vector<8x1xf32> -> vector<8x1xf32>
      %c0_83 = arith.constant 0 : index
      %c0_84 = arith.constant 0 : index
      %102 = vector.load %arg9[%c0_83, %c0_84] : memref<8x128xf32, #tpu.memory_space<vmem>>, vector<8x128xf32>
      %103 = vector.broadcast %101 : vector<8x1xf32> to vector<8x128xf32>
      %104 = arith.mulf %102, %103 : vector<8x128xf32>
      %c0_85 = arith.constant 0 : index
      %c0_86 = arith.constant 0 : index
      %105 = vector.load %arg5[%c0_85, %c0_86] : memref<8x128xf32, #tpu.memory_space<vmem>>, vector<8x128xf32>
      tpu.vector_store %arg5[%c0_85, %c0_86], %104 {strides = array<i32>} : memref<8x128xf32, #tpu.memory_space<vmem>>, vector<8x128xf32>,
      %c0_87 = arith.constant 0 : index
      %c0_88 = arith.constant 0 : index
      %106 = vector.load %arg7[%c0_87, %c0_88] : memref<8x1xf32, #tpu.memory_space<vmem>>, vector<8x1xf32>
      %c0_89 = arith.constant 0 : index
      %c0_90 = arith.constant 0 : index
      %c0_91 = arith.constant 0 : index
      %107 = vector.load %arg11[%c0_89, %c0_90, %c0_91] : memref<1x8x128xf32, #tpu.memory_space<vmem>>, vector<1x8x128xf32>
      %108 = vector.shape_cast %107 : vector<1x8x128xf32> to vector<8x128xf32>
      %109 = vector.broadcast %106 : vector<8x1xf32> to vector<8x128xf32>
      %110 = arith.subf %108, %109 : vector<8x128xf32>
      %111 = math.exp %110 : vector<8x128xf32>
      %112 = vector.broadcast %101 : vector<8x1xf32> to vector<8x128xf32>
      %113 = arith.mulf %111, %112 : vector<8x128xf32>
      %c0_92 = arith.constant 0 : index
      %c0_93 = arith.constant 0 : index
      %114 = vector.load %arg6[%c0_92, %c0_93] : memref<8x128xf32, #tpu.memory_space<vmem>>, vector<8x128xf32>
      tpu.vector_store %arg6[%c0_92, %c0_93], %113 {strides = array<i32>} : memref<8x128xf32, #tpu.memory_space<vmem>>, vector<8x128xf32>,
    } else {
    }
    return
  }
  func.func @transform_0(%arg0: i32, %arg1: i32) -> (i32, i32, i32) {
    %c0_i32 = arith.constant 0 : i32
    %c0_i32_0 = arith.constant 0 : i32
    return %arg0, %arg1, %c0_i32 : i32, i32, i32
  }
  func.func @transform_1(%arg0: i32, %arg1: i32) -> (i32, i32) {
    %c0_i32 = arith.constant 0 : i32
    %c0_i32_0 = arith.constant 0 : i32
    return %arg0, %c0_i32 : i32, i32
  }
  func.func @transform_2(%arg0: i32, %arg1: i32) -> (i32, i32) {
    %c0_i32 = arith.constant 0 : i32
    return %arg0, %arg1 : i32, i32
  }
  func.func @transform_3(%arg0: i32, %arg1: i32) -> (i32, i32) {
    %c0_i32 = arith.constant 0 : i32
    %c0_i32_0 = arith.constant 0 : i32
    return %arg0, %c0_i32 : i32, i32
  }
  func.func @transform_4(%arg0: i32, %arg1: i32) -> (i32, i32) {
    %c0_i32 = arith.constant 0 : i32
    %c0_i32_0 = arith.constant 0 : i32
    return %arg0, %c0_i32 : i32, i32
  }
}

</mosaic_0001>

<llo_original>
// kernel: tpu_custom_call.1
$region0: #{tpu_custom_call.1}
  #allocation0 [shape = 'u32[]', space=smem, size = 0x4, offset = 0x4, fixed_abs, tag = 'smem constant byte address 0x4 - core index']
  #allocation1 [shape = 'u32[144,128]{1,0:T(1,128)}', space=vmem, size = 0x12000, scoped, tag = 'internal scratch']
  #allocation2 [shape = 'f32[8,1]{1,0:T(8,128)}', space=vmem, size = 0x1000, scoped, tag = 'scratch operand']
  #allocation3 [shape = 'f32[8,1]{1,0:T(8,128)}', space=vmem, size = 0x1000, scoped, tag = 'scratch operand']
  #allocation4 [shape = 'f32[8,128]{1,0:T(8,128)}', space=vmem, size = 0x1000, scoped, tag = 'scratch operand']
  #allocation5 [shape = 'f32[8,128]{1,0:T(8,128)}', space=vmem, size = 0x1000, scoped, tag = 'scratch operand']
  #allocation6 [shape = 'f32[1,8,128]{2,1,0:T(8,128)}', space=vmem, size = 0x1000, scoped, tag = 'scratch operand']
  %s0 = inlined_call_operand.hbm [shape: f32[8,128,128], index: 0, kind: input, shape index: {}]
  %s1 = inlined_call_operand.hbm [shape: f32[8,128], index: 1, kind: input, shape index: {}]
  %s2 = inlined_call_operand.hbm [shape: f32[8,128], index: 2, kind: input, shape index: {}]
  %s3 = inlined_call_operand.hbm [shape: f32[8,128], index: 3, kind: output, shape index: {0}]
  %s4 = inlined_call_operand.hbm [shape: f32[8,128], index: 4, kind: output, shape index: {1}]
  %5 = xla_tuple %s3, %s4
  %s6 = sld [smem:[#allocation0]]
  $region50: #{tpu_custom_call.1} parent=0
    _
  %s8 = ssub.s32 1, %s6
  %s9 = scalar_select 0, %s8, %s6
  $region1: #{tpu_custom_call.1} parent=0
    #allocation7 [shape = 'u8[524288]{0}', space=vmem, size = 0x80000, scoped, tag = 'input window, operand 0, single buffered']
    #allocation8 [shape = 's32[1]{0}', space=sflag, size = 0x4, scoped, tag = 'scoped memory for tpu_custom_call.1']
    #allocation9 [shape = 's32[1]{0}', space=sflag, size = 0x4, scoped, tag = 'scoped memory for tpu_custom_call.1']
    #allocation10 [shape = 'u8[4096]{0}', space=vmem, size = 0x1000, scoped, tag = 'input window, operand 1, single buffered']
    #allocation11 [shape = 's32[1]{0}', space=sflag, size = 0x4, scoped, tag = 'scoped memory for tpu_custom_call.1']
    #allocation12 [shape = 'u8[4096]{0}', space=vmem, size = 0x1000, scoped, tag = 'input window, operand 2, single buffered']
    #allocation13 [shape = 'u8[4096]{0}', space=vmem, size = 0x1000, scoped, tag = 'output window, operand 0, single buffered']
    #allocation14 [shape = 'u8[4096]{0}', space=vmem, size = 0x1000, scoped, tag = 'output window, operand 1, single buffered']
    #allocation15 [shape = 's32[1]{0}', space=sflag, size = 0x4, scoped, tag = 'scoped memory for tpu_custom_call.1']
    %10 = vsyncpa [#allocation8], 0
    %11 = vsyncpa [#allocation11], 0
    %12 = vsyncpa [#allocation9], 0
    %13 = vsyncpa [#allocation15], 0
    // Predicated region
    $region2: #{tpu_custom_call.1} parent=1 // pred_check
      _
    $region3: #{tpu_custom_call.1} parent=1 // pred_check_branch
      %15 = sbr.rel (0) target = $region5
    $region4: #{tpu_custom_call.1} parent=1 // pred_region
      %s17 = ssub.s32 16384, 16384
      %18 = vsyncadd [#allocation8], %s17
      %s19 = sshll.u32 [#allocation7], 4
      %s20 = int_to_ptr.vmem [resolvable:$true] %s19
      %25 = dma.hbm_to_vmem [thread:$0]  %s0, 16384, %s20, [#allocation8], 128, 128, 8
    $region5: #{tpu_custom_call.1} parent=1 // pred_fallthru
      _
    // Predicated region
    $region6: #{tpu_custom_call.1} parent=1 // pred_check
      _
    $region7: #{tpu_custom_call.1} parent=1 // pred_check_branch
      %27 = sbr.rel (0) target = $region9
    $region8: #{tpu_custom_call.1} parent=1 // pred_region
      %s29 = ssub.s32 128, 128
      %30 = vsyncadd [#allocation11], %s29
      %s32 = sshll.u32 [#allocation10], 4
      %s33 = int_to_ptr.vmem [resolvable:$true] %s32
      %35 = dma.hbm_to_vmem [thread:$0]  %s1, 128, %s33, [#allocation11]
    $region9: #{tpu_custom_call.1} parent=1 // pred_fallthru
      _
    // Predicated region
    $region10: #{tpu_custom_call.1} parent=1 // pred_check
      _
    $region11: #{tpu_custom_call.1} parent=1 // pred_check_branch
      %37 = sbr.rel (0) target = $region13
    $region12: #{tpu_custom_call.1} parent=1 // pred_region
      %s39 = ssub.s32 128, 128
      %40 = vsyncadd [#allocation11], %s39
      %s42 = sshll.u32 [#allocation12], 4
      %s43 = int_to_ptr.vmem [resolvable:$true] %s42
      %45 = dma.hbm_to_vmem [thread:$0]  %s2, 128, %s43, [#allocation11]
    $region13: #{tpu_custom_call.1} parent=1 // pred_fallthru
      _
    // Predicated region
    $region14: #{tpu_custom_call.1} parent=1 // pred_check
      _
    $region15: #{tpu_custom_call.1} parent=1 // pred_check_branch
      %47 = sbr.rel (0) target = $region17
    $region16: #{tpu_custom_call.1} parent=1 // pred_region
      %48 = dma.done [#allocation8], 16384
    $region17: #{tpu_custom_call.1} parent=1 // pred_fallthru
      _
    // Predicated region
    $region18: #{tpu_custom_call.1} parent=1 // pred_check
      _
    $region19: #{tpu_custom_call.1} parent=1 // pred_check_branch
      %50 = sbr.rel (0) target = $region21
    $region20: #{tpu_custom_call.1} parent=1 // pred_region
      %51 = dma.done [#allocation11], 128
    $region21: #{tpu_custom_call.1} parent=1 // pred_fallthru
      _
    // Predicated region
    $region22: #{tpu_custom_call.1} parent=1 // pred_check
      _
    $region23: #{tpu_custom_call.1} parent=1 // pred_check_branch
      %53 = sbr.rel (0) target = $region25
    $region24: #{tpu_custom_call.1} parent=1 // pred_region
      %54 = dma.done [#allocation11], 128
    $region25: #{tpu_custom_call.1} parent=1 // pred_fallthru
      _
    %p55 = scmp.eq.s32.totalorder 0, 0
    // Predicated region
    $region26: #{tpu_custom_call.1} parent=1 // pred_check
      %p56 = pneg %p55
    $region27: #{tpu_custom_call.1} parent=1 // pred_check_branch
      %58 = sbr.rel (%p56) target = $region29
    $region28: #{tpu_custom_call.1} parent=1 // pred_region
      %vm59 = vcmask 7168
      %60 = vst.msk [vmem:[#allocation2] sm:$0xff] %vm59, -inf
      %61 = vst.msk [vmem:[#allocation3] sm:$0xff] %vm59, 0.0
      %62 = vst [vmem:[#allocation4] sm:$0xff] 0.0
    $region29: #{tpu_custom_call.1} parent=1 // pred_fallthru
      _
    %v63 = vld [vmem:[#allocation7] sm:$0xff]
    %v64 = vld [vmem:[#allocation7 + $0x8] sm:$0xff]
    %v65 = vld [vmem:[#allocation7 + $0x10] sm:$0xff]
    %v66 = vld [vmem:[#allocation7 + $0x18] sm:$0xff]
    %v67 = vld [vmem:[#allocation7 + $0x80] sm:$0xff]
    %v68 = vld [vmem:[#allocation7 + $0x88] sm:$0xff]
    %v69 = vld [vmem:[#allocation7 + $0x90] sm:$0xff]
    %v70 = vld [vmem:[#allocation7 + $0x98] sm:$0xff]
    %v71 = vld [vmem:[#allocation7 + $0x100] sm:$0xff]
    %v72 = vld [vmem:[#allocation7 + $0x108] sm:$0xff]
    %v73 = vld [vmem:[#allocation7 + $0x110] sm:$0xff]
    %v74 = vld [vmem:[#allocation7 + $0x118] sm:$0xff]
    %v75 = vld [vmem:[#allocation7 + $0x180] sm:$0xff]
    %v76 = vld [vmem:[#allocation7 + $0x188] sm:$0xff]
    %v77 = vld [vmem:[#allocation7 + $0x190] sm:$0xff]
    %v78 = vld [vmem:[#allocation7 + $0x198] sm:$0xff]
    %v79 = vld [vmem:[#allocation7 + $0x200] sm:$0xff]
    %v80 = vld [vmem:[#allocation7 + $0x208] sm:$0xff]
    %v81 = vld [vmem:[#allocation7 + $0x210] sm:$0xff]
    %v82 = vld [vmem:[#allocation7 + $0x218] sm:$0xff]
    %v83 = vld [vmem:[#allocation7 + $0x280] sm:$0xff]
    %v84 = vld [vmem:[#allocation7 + $0x288] sm:$0xff]
    %v85 = vld [vmem:[#allocation7 + $0x290] sm:$0xff]
    %v86 = vld [vmem:[#allocation7 + $0x298] sm:$0xff]
    %v87 = vld [vmem:[#allocation7 + $0x300] sm:$0xff]
    %v88 = vld [vmem:[#allocation7 + $0x308] sm:$0xff]
    %v89 = vld [vmem:[#allocation7 + $0x310] sm:$0xff]
    %v90 = vld [vmem:[#allocation7 + $0x318] sm:$0xff]
    %v91 = vld [vmem:[#allocation7 + $0x380] sm:$0xff]
    %v92 = vld [vmem:[#allocation7 + $0x388] sm:$0xff]
    %v93 = vld [vmem:[#allocation7 + $0x390] sm:$0xff]
    %v94 = vld [vmem:[#allocation7 + $0x398] sm:$0xff]
    %v95 = vld [vmem:[#allocation10] sm:$0xff]
    %v97 = vcombine.high %v95, %v95
    %v99 = vunpack.c.l.s4 1966171168
    %v100 = vunpack.c.0.s8 %v99
    %v101 = vlaneseq
    %v102 = vshrl.u32 %v101, 7
    %v103 = vsub.s32 %v100, %v102
    %v104 = vrot.slane %v95, %v103
    %v106 = vunpack.c.l.s4 1966171168
    %v107 = vunpack.c.0.s8 %v106
    %v108 = vlaneseq
    %v109 = vshrl.u32 %v108, 7
    %v110 = vsub.s32 %v107, %v109
    %v111 = vrot.slane %v97, %v110
    %v112 = vcombine.high %v104, %v104
    %v113 = vcombine.high %v111, %v111
    %v115 = vunpack.c.l.s4 1966171168
    %v116 = vunpack.c.0.s8 %v115
    %v117 = vlaneseq
    %v118 = vshrl.u32 %v117, 7
    %v119 = vsub.s32 %v116, %v118
    %v120 = vrot.slane %v104, %v119
    %v122 = vunpack.c.l.s4 1966171168
    %v123 = vunpack.c.0.s8 %v122
    %v124 = vlaneseq
    %v125 = vshrl.u32 %v124, 7
    %v126 = vsub.s32 %v123, %v125
    %v127 = vrot.slane %v111, %v126
    %v129 = vunpack.c.l.s4 1966171168
    %v130 = vunpack.c.0.s8 %v129
    %v131 = vlaneseq
    %v132 = vshrl.u32 %v131, 7
    %v133 = vsub.s32 %v130, %v132
    %v134 = vrot.slane %v112, %v133
    %v136 = vunpack.c.l.s4 1966171168
    %v137 = vunpack.c.0.s8 %v136
    %v138 = vlaneseq
    %v139 = vshrl.u32 %v138, 7
    %v140 = vsub.s32 %v137, %v139
    %v141 = vrot.slane %v113, %v140
    %v142 = vcombine.high %v120, %v120
    %v143 = vcombine.high %v127, %v127
    %v144 = vcombine.high %v134, %v134
    %v145 = vcombine.high %v141, %v141
    %v146 = vlaneseq
    %v147 = vshrl.u32 %v146, 7
    %v148 = vsub.s32 0, %v147
    %v149 = vrot.slane %v120, %v148
    %v150 = vlaneseq
    %v151 = vshrl.u32 %v150, 7
    %v152 = vsub.s32 0, %v151
    %v153 = vrot.slane %v134, %v152
    %v154 = vlaneseq
    %v155 = vshrl.u32 %v154, 7
    %v156 = vsub.s32 0, %v155
    %v157 = vrot.slane %v142, %v156
    %v158 = vlaneseq
    %v159 = vshrl.u32 %v158, 7
    %v160 = vsub.s32 0, %v159
    %v161 = vrot.slane %v144, %v160
    %v162 = vlaneseq
    %v163 = vshrl.u32 %v162, 7
    %v164 = vsub.s32 0, %v163
    %v165 = vrot.slane %v127, %v164
    %v166 = vlaneseq
    %v167 = vshrl.u32 %v166, 7
    %v168 = vsub.s32 0, %v167
    %v169 = vrot.slane %v141, %v168
    %v170 = vlaneseq
    %v171 = vshrl.u32 %v170, 7
    %v172 = vsub.s32 0, %v171
    %v173 = vrot.slane %v143, %v172
    %v174 = vlaneseq
    %v175 = vshrl.u32 %v174, 7
    %v176 = vsub.s32 0, %v175
    %v177 = vrot.slane %v145, %v176
    %v186 = vmul.f32 %v63, %v149
    %v187 = vmul.f32 %v64, %v149
    %v188 = vmul.f32 %v65, %v149
    %v189 = vmul.f32 %v66, %v149
    %v190 = vmul.f32 %v67, %v153
    %v191 = vmul.f32 %v68, %v153
    %v192 = vmul.f32 %v69, %v153
    %v193 = vmul.f32 %v70, %v153
    %v194 = vmul.f32 %v71, %v157
    %v195 = vmul.f32 %v72, %v157
    %v196 = vmul.f32 %v73, %v157
    %v197 = vmul.f32 %v74, %v157
    %v198 = vmul.f32 %v75, %v161
    %v199 = vmul.f32 %v76, %v161
    %v200 = vmul.f32 %v77, %v161
    %v201 = vmul.f32 %v78, %v161
    %v202 = vmul.f32 %v79, %v165
    %v203 = vmul.f32 %v80, %v165
    %v204 = vmul.f32 %v81, %v165
    %v205 = vmul.f32 %v82, %v165
    %v206 = vmul.f32 %v83, %v169
    %v207 = vmul.f32 %v84, %v169
    %v208 = vmul.f32 %v85, %v169
    %v209 = vmul.f32 %v86, %v169
    %v210 = vmul.f32 %v87, %v173
    %v211 = vmul.f32 %v88, %v173
    %v212 = vmul.f32 %v89, %v173
    %v213 = vmul.f32 %v90, %v173
    %v214 = vmul.f32 %v91, %v177
    %v215 = vmul.f32 %v92, %v177
    %v216 = vmul.f32 %v93, %v177
    %v217 = vmul.f32 %v94, %v177
    %218 = vadd.xlane.f32.xlu0 %v186
    %v219 = vpop.xlane.xlu0 %218
    %220 = vadd.xlane.f32.xlu0 %v187
    %v221 = vpop.xlane.xlu0 %220
    %222 = vadd.xlane.f32.xlu0 %v188
    %v223 = vpop.xlane.xlu0 %222
    %224 = vadd.xlane.f32.xlu0 %v189
    %v225 = vpop.xlane.xlu0 %224
    %226 = vadd.xlane.f32.xlu0 %v190
    %v227 = vpop.xlane.xlu0 %226
    %228 = vadd.xlane.f32.xlu0 %v191
    %v229 = vpop.xlane.xlu0 %228
    %230 = vadd.xlane.f32.xlu0 %v192
    %v231 = vpop.xlane.xlu0 %230
    %232 = vadd.xlane.f32.xlu0 %v193
    %v233 = vpop.xlane.xlu0 %232
    %234 = vadd.xlane.f32.xlu0 %v194
    %v235 = vpop.xlane.xlu0 %234
    %236 = vadd.xlane.f32.xlu0 %v195
    %v237 = vpop.xlane.xlu0 %236
    %238 = vadd.xlane.f32.xlu0 %v196
    %v239 = vpop.xlane.xlu0 %238
    %240 = vadd.xlane.f32.xlu0 %v197
    %v241 = vpop.xlane.xlu0 %240
    %242 = vadd.xlane.f32.xlu0 %v198
    %v243 = vpop.xlane.xlu0 %242
    %244 = vadd.xlane.f32.xlu0 %v199
    %v245 = vpop.xlane.xlu0 %244
    %246 = vadd.xlane.f32.xlu0 %v200
    %v247 = vpop.xlane.xlu0 %246
    %248 = vadd.xlane.f32.xlu0 %v201
    %v249 = vpop.xlane.xlu0 %248
    %250 = vadd.xlane.f32.xlu0 %v202
    %v251 = vpop.xlane.xlu0 %250
    %252 = vadd.xlane.f32.xlu0 %v203
    %v253 = vpop.xlane.xlu0 %252
    %254 = vadd.xlane.f32.xlu0 %v204
    %v255 = vpop.xlane.xlu0 %254
    %256 = vadd.xlane.f32.xlu0 %v205
    %v257 = vpop.xlane.xlu0 %256
    %258 = vadd.xlane.f32.xlu0 %v206
    %v259 = vpop.xlane.xlu0 %258
    %260 = vadd.xlane.f32.xlu0 %v207
    %v261 = vpop.xlane.xlu0 %260
    %262 = vadd.xlane.f32.xlu0 %v208
    %v263 = vpop.xlane.xlu0 %262
    %264 = vadd.xlane.f32.xlu0 %v209
    %v265 = vpop.xlane.xlu0 %264
    %266 = vadd.xlane.f32.xlu0 %v210
    %v267 = vpop.xlane.xlu0 %266
    %268 = vadd.xlane.f32.xlu0 %v211
    %v269 = vpop.xlane.xlu0 %268
    %270 = vadd.xlane.f32.xlu0 %v212
    %v271 = vpop.xlane.xlu0 %270
    %272 = vadd.xlane.f32.xlu0 %v213
    %v273 = vpop.xlane.xlu0 %272
    %274 = vadd.xlane.f32.xlu0 %v214
    %v275 = vpop.xlane.xlu0 %274
    %276 = vadd.xlane.f32.xlu0 %v215
    %v277 = vpop.xlane.xlu0 %276
    %278 = vadd.xlane.f32.xlu0 %v216
    %v279 = vpop.xlane.xlu0 %278
    %280 = vadd.xlane.f32.xlu0 %v217
    %v281 = vpop.xlane.xlu0 %280
    %v282 = vadd.f32 %v219, 0.0
    %v283 = vadd.f32 %v221, 0.0
    %v284 = vadd.f32 %v223, 0.0
    %v285 = vadd.f32 %v225, 0.0
    %v286 = vadd.f32 %v227, 0.0
    %v287 = vadd.f32 %v229, 0.0
    %v288 = vadd.f32 %v231, 0.0
    %v289 = vadd.f32 %v233, 0.0
    %v290 = vadd.f32 %v235, 0.0
    %v291 = vadd.f32 %v237, 0.0
    %v292 = vadd.f32 %v239, 0.0
    %v293 = vadd.f32 %v241, 0.0
    %v294 = vadd.f32 %v243, 0.0
    %v295 = vadd.f32 %v245, 0.0
    %v296 = vadd.f32 %v247, 0.0
    %v297 = vadd.f32 %v249, 0.0
    %v298 = vadd.f32 %v251, 0.0
    %v299 = vadd.f32 %v253, 0.0
    %v300 = vadd.f32 %v255, 0.0
    %v301 = vadd.f32 %v257, 0.0
    %v302 = vadd.f32 %v259, 0.0
    %v303 = vadd.f32 %v261, 0.0
    %v304 = vadd.f32 %v263, 0.0
    %v305 = vadd.f32 %v265, 0.0
    %v306 = vadd.f32 %v267, 0.0
    %v307 = vadd.f32 %v269, 0.0
    %v308 = vadd.f32 %v271, 0.0
    %v309 = vadd.f32 %v273, 0.0
    %v310 = vadd.f32 %v275, 0.0
    %v311 = vadd.f32 %v277, 0.0
    %v312 = vadd.f32 %v279, 0.0
    %v313 = vadd.f32 %v281, 0.0
    %v346 = vlaneseq
    %v347 = vand.u32 %v346, 127
    %v348 = vlaneseq
    %v349 = vshrl.u32 %v348, 7
    %v350 = vsub.s32 %v347, %v349
    %v351 = vrot.slane %v282, %v350
    %v352 = vadd.s32 %v347, 4294967288
    %v353 = vlaneseq
    %v354 = vshrl.u32 %v353, 7
    %v355 = vsub.s32 %v352, %v354
    %v356 = vrot.slane %v283, %v355
    %vm357 = vcmask 130112
    %v358 = vsel %vm357, %v356, %v351
    %v359 = vadd.s32 %v347, 4294967280
    %v360 = vlaneseq
    %v361 = vshrl.u32 %v360, 7
    %v362 = vsub.s32 %v359, %v361
    %v363 = vrot.slane %v284, %v362
    %vm364 = vcmask 195712
    %v365 = vsel %vm364, %v363, %v358
    %v366 = vadd.s32 %v347, 4294967272
    %v367 = vlaneseq
    %v368 = vshrl.u32 %v367, 7
    %v369 = vsub.s32 %v366, %v368
    %v370 = vrot.slane %v285, %v369
    %vm371 = vcmask 261312
    %v372 = vsel %vm371, %v370, %v365
    %v373 = vlaneseq
    %v374 = vshrl.u32 %v373, 7
    %v375 = vsub.s32 %v347, %v374
    %v376 = vrot.slane %v286, %v375
    %v377 = vlaneseq
    %v378 = vshrl.u32 %v377, 7
    %v379 = vsub.s32 %v352, %v378
    %v380 = vrot.slane %v287, %v379
    %v381 = vsel %vm357, %v380, %v376
    %v382 = vlaneseq
    %v383 = vshrl.u32 %v382, 7
    %v384 = vsub.s32 %v359, %v383
    %v385 = vrot.slane %v288, %v384
    %v386 = vsel %vm364, %v385, %v381
    %v387 = vlaneseq
    %v388 = vshrl.u32 %v387, 7
    %v389 = vsub.s32 %v366, %v388
    %v390 = vrot.slane %v289, %v389
    %v391 = vsel %vm371, %v390, %v386
    %v392 = vlaneseq
    %v393 = vshrl.u32 %v392, 7
    %v394 = vsub.s32 %v347, %v393
    %v395 = vrot.slane %v290, %v394
    %v396 = vlaneseq
    %v397 = vshrl.u32 %v396, 7
    %v398 = vsub.s32 %v352, %v397
    %v399 = vrot.slane %v291, %v398
    %v400 = vsel %vm357, %v399, %v395
    %v401 = vlaneseq
    %v402 = vshrl.u32 %v401, 7
    %v403 = vsub.s32 %v359, %v402
    %v404 = vrot.slane %v292, %v403
    %v405 = vsel %vm364, %v404, %v400
    %v406 = vlaneseq
    %v407 = vshrl.u32 %v406, 7
    %v408 = vsub.s32 %v366, %v407
    %v409 = vrot.slane %v293, %v408
    %v410 = vsel %vm371, %v409, %v405
    %v411 = vlaneseq
    %v412 = vshrl.u32 %v411, 7
    %v413 = vsub.s32 %v347, %v412
    %v414 = vrot.slane %v294, %v413
    %v415 = vlaneseq
    %v416 = vshrl.u32 %v415, 7
    %v417 = vsub.s32 %v352, %v416
    %v418 = vrot.slane %v295, %v417
    %v419 = vsel %vm357, %v418, %v414
    %v420 = vlaneseq
    %v421 = vshrl.u32 %v420, 7
    %v422 = vsub.s32 %v359, %v421
    %v423 = vrot.slane %v296, %v422
    %v424 = vsel %vm364, %v423, %v419
    %v425 = vlaneseq
    %v426 = vshrl.u32 %v425, 7
    %v427 = vsub.s32 %v366, %v426
    %v428 = vrot.slane %v297, %v427
    %v429 = vsel %vm371, %v428, %v424
    %v430 = vlaneseq
    %v431 = vshrl.u32 %v430, 7
    %v432 = vsub.s32 %v347, %v431
    %v433 = vrot.slane %v298, %v432
    %v434 = vlaneseq
    %v435 = vshrl.u32 %v434, 7
    %v436 = vsub.s32 %v352, %v435
    %v437 = vrot.slane %v299, %v436
    %v438 = vsel %vm357, %v437, %v433
    %v439 = vlaneseq
    %v440 = vshrl.u32 %v439, 7
    %v441 = vsub.s32 %v359, %v440
    %v442 = vrot.slane %v300, %v441
    %v443 = vsel %vm364, %v442, %v438
    %v444 = vlaneseq
    %v445 = vshrl.u32 %v444, 7
    %v446 = vsub.s32 %v366, %v445
    %v447 = vrot.slane %v301, %v446
    %v448 = vsel %vm371, %v447, %v443
    %v449 = vlaneseq
    %v450 = vshrl.u32 %v449, 7
    %v451 = vsub.s32 %v347, %v450
    %v452 = vrot.slane %v302, %v451
    %v453 = vlaneseq
    %v454 = vshrl.u32 %v453, 7
    %v455 = vsub.s32 %v352, %v454
    %v456 = vrot.slane %v303, %v455
    %v457 = vsel %vm357, %v456, %v452
    %v458 = vlaneseq
    %v459 = vshrl.u32 %v458, 7
    %v460 = vsub.s32 %v359, %v459
    %v461 = vrot.slane %v304, %v460
    %v462 = vsel %vm364, %v461, %v457
    %v463 = vlaneseq
    %v464 = vshrl.u32 %v463, 7
    %v465 = vsub.s32 %v366, %v464
    %v466 = vrot.slane %v305, %v465
    %v467 = vsel %vm371, %v466, %v462
    %v468 = vlaneseq
    %v469 = vshrl.u32 %v468, 7
    %v470 = vsub.s32 %v347, %v469
    %v471 = vrot.slane %v306, %v470
    %v472 = vlaneseq
    %v473 = vshrl.u32 %v472, 7
    %v474 = vsub.s32 %v352, %v473
    %v475 = vrot.slane %v307, %v474
    %v476 = vsel %vm357, %v475, %v471
    %v477 = vlaneseq
    %v478 = vshrl.u32 %v477, 7
    %v479 = vsub.s32 %v359, %v478
    %v480 = vrot.slane %v308, %v479
    %v481 = vsel %vm364, %v480, %v476
    %v482 = vlaneseq
    %v483 = vshrl.u32 %v482, 7
    %v484 = vsub.s32 %v366, %v483
    %v485 = vrot.slane %v309, %v484
    %v486 = vsel %vm371, %v485, %v481
    %v487 = vlaneseq
    %v488 = vshrl.u32 %v487, 7
    %v489 = vsub.s32 %v347, %v488
    %v490 = vrot.slane %v310, %v489
    %v491 = vlaneseq
    %v492 = vshrl.u32 %v491, 7
    %v493 = vsub.s32 %v352, %v492
    %v494 = vrot.slane %v311, %v493
    %v495 = vsel %vm357, %v494, %v490
    %v496 = vlaneseq
    %v497 = vshrl.u32 %v496, 7
    %v498 = vsub.s32 %v359, %v497
    %v499 = vrot.slane %v312, %v498
    %v500 = vsel %vm364, %v499, %v495
    %v501 = vlaneseq
    %v502 = vshrl.u32 %v501, 7
    %v503 = vsub.s32 %v366, %v502
    %v504 = vrot.slane %v313, %v503
    %v505 = vsel %vm371, %v504, %v500
    %vm506 = vcmask 1041409
    %v507 = vsel %vm506, %v391, %v372
    %vm508 = vcmask 1042434
    %v509 = vsel %vm508, %v410, %v507
    %vm510 = vcmask 1043459
    %v511 = vsel %vm510, %v429, %v509
    %vm512 = vcmask 1044484
    %v513 = vsel %vm512, %v448, %v511
    %vm514 = vcmask 1045509
    %v515 = vsel %vm514, %v467, %v513
    %vm516 = vcmask 1046534
    %v517 = vsel %vm516, %v486, %v515
    %vm518 = vcmask 1047559
    %v519 = vsel %vm518, %v505, %v517
    %vm521 = vcmask 261120
    %522 = vst.msk [vmem:[#allocation5] sm:$0xff] %vm521, %v519
    %v523 = vld [vmem:[#allocation7 + $0x20] sm:$0xff]
    %v524 = vld [vmem:[#allocation7 + $0x28] sm:$0xff]
    %v525 = vld [vmem:[#allocation7 + $0x30] sm:$0xff]
    %v526 = vld [vmem:[#allocation7 + $0x38] sm:$0xff]
    %v527 = vld [vmem:[#allocation7 + $0xa0] sm:$0xff]
    %v528 = vld [vmem:[#allocation7 + $0xa8] sm:$0xff]
    %v529 = vld [vmem:[#allocation7 + $0xb0] sm:$0xff]
    %v530 = vld [vmem:[#allocation7 + $0xb8] sm:$0xff]
    %v531 = vld [vmem:[#allocation7 + $0x120] sm:$0xff]
    %v532 = vld [vmem:[#allocation7 + $0x128] sm:$0xff]
    %v533 = vld [vmem:[#allocation7 + $0x130] sm:$0xff]
    %v534 = vld [vmem:[#allocation7 + $0x138] sm:$0xff]
    %v535 = vld [vmem:[#allocation7 + $0x1a0] sm:$0xff]
    %v536 = vld [vmem:[#allocation7 + $0x1a8] sm:$0xff]
    %v537 = vld [vmem:[#allocation7 + $0x1b0] sm:$0xff]
    %v538 = vld [vmem:[#allocation7 + $0x1b8] sm:$0xff]
    %v539 = vld [vmem:[#allocation7 + $0x220] sm:$0xff]
    %v540 = vld [vmem:[#allocation7 + $0x228] sm:$0xff]
    %v541 = vld [vmem:[#allocation7 + $0x230] sm:$0xff]
    %v542 = vld [vmem:[#allocation7 + $0x238] sm:$0xff]
    %v543 = vld [vmem:[#allocation7 + $0x2a0] sm:$0xff]
    %v544 = vld [vmem:[#allocation7 + $0x2a8] sm:$0xff]
    %v545 = vld [vmem:[#allocation7 + $0x2b0] sm:$0xff]
    %v546 = vld [vmem:[#allocation7 + $0x2b8] sm:$0xff]
    %v547 = vld [vmem:[#allocation7 + $0x320] sm:$0xff]
    %v548 = vld [vmem:[#allocation7 + $0x328] sm:$0xff]
    %v549 = vld [vmem:[#allocation7 + $0x330] sm:$0xff]
    %v550 = vld [vmem:[#allocation7 + $0x338] sm:$0xff]
    %v551 = vld [vmem:[#allocation7 + $0x3a0] sm:$0xff]
    %v552 = vld [vmem:[#allocation7 + $0x3a8] sm:$0xff]
    %v553 = vld [vmem:[#allocation7 + $0x3b0] sm:$0xff]
    %v554 = vld [vmem:[#allocation7 + $0x3b8] sm:$0xff]
    %v555 = vld [vmem:[#allocation10] sm:$0xff]
    %v557 = vcombine.high %v555, %v555
    %v559 = vunpack.c.l.s4 1966171168
    %v560 = vunpack.c.0.s8 %v559
    %v561 = vlaneseq
    %v562 = vshrl.u32 %v561, 7
    %v563 = vsub.s32 %v560, %v562
    %v564 = vrot.slane %v555, %v563
    %v566 = vunpack.c.l.s4 1966171168
    %v567 = vunpack.c.0.s8 %v566
    %v568 = vlaneseq
    %v569 = vshrl.u32 %v568, 7
    %v570 = vsub.s32 %v567, %v569
    %v571 = vrot.slane %v557, %v570
    %v572 = vcombine.high %v564, %v564
    %v573 = vcombine.high %v571, %v571
    %v575 = vunpack.c.l.s4 1966171168
    %v576 = vunpack.c.0.s8 %v575
    %v577 = vlaneseq
    %v578 = vshrl.u32 %v577, 7
    %v579 = vsub.s32 %v576, %v578
    %v580 = vrot.slane %v564, %v579
    %v582 = vunpack.c.l.s4 1966171168
    %v583 = vunpack.c.0.s8 %v582
    %v584 = vlaneseq
    %v585 = vshrl.u32 %v584, 7
    %v586 = vsub.s32 %v583, %v585
    %v587 = vrot.slane %v571, %v586
    %v589 = vunpack.c.l.s4 1966171168
    %v590 = vunpack.c.0.s8 %v589
    %v591 = vlaneseq
    %v592 = vshrl.u32 %v591, 7
    %v593 = vsub.s32 %v590, %v592
    %v594 = vrot.slane %v572, %v593
    %v596 = vunpack.c.l.s4 1966171168
    %v597 = vunpack.c.0.s8 %v596
    %v598 = vlaneseq
    %v599 = vshrl.u32 %v598, 7
    %v600 = vsub.s32 %v597, %v599
    %v601 = vrot.slane %v573, %v600
    %v602 = vcombine.high %v580, %v580
    %v603 = vcombine.high %v587, %v587
    %v604 = vcombine.high %v594, %v594
    %v605 = vcombine.high %v601, %v601
    %v606 = vlaneseq
    %v607 = vshrl.u32 %v606, 7
    %v608 = vsub.s32 0, %v607
    %v609 = vrot.slane %v580, %v608
    %v610 = vlaneseq
    %v611 = vshrl.u32 %v610, 7
    %v612 = vsub.s32 0, %v611
    %v613 = vrot.slane %v594, %v612
    %v614 = vlaneseq
    %v615 = vshrl.u32 %v614, 7
    %v616 = vsub.s32 0, %v615
    %v617 = vrot.slane %v602, %v616
    %v618 = vlaneseq
    %v619 = vshrl.u32 %v618, 7
    %v620 = vsub.s32 0, %v619
    %v621 = vrot.slane %v604, %v620
    %v622 = vlaneseq
    %v623 = vshrl.u32 %v622, 7
    %v624 = vsub.s32 0, %v623
    %v625 = vrot.slane %v587, %v624
    %v626 = vlaneseq
    %v627 = vshrl.u32 %v626, 7
    %v628 = vsub.s32 0, %v627
    %v629 = vrot.slane %v601, %v628
    %v630 = vlaneseq
    %v631 = vshrl.u32 %v630, 7
    %v632 = vsub.s32 0, %v631
    %v633 = vrot.slane %v603, %v632
    %v634 = vlaneseq
    %v635 = vshrl.u32 %v634, 7
    %v636 = vsub.s32 0, %v635
    %v637 = vrot.slane %v605, %v636
    %v646 = vmul.f32 %v523, %v609
    %v647 = vmul.f32 %v524, %v609
    %v648 = vmul.f32 %v525, %v609
    %v649 = vmul.f32 %v526, %v609
    %v650 = vmul.f32 %v527, %v613
    %v651 = vmul.f32 %v528, %v613
    %v652 = vmul.f32 %v529, %v613
    %v653 = vmul.f32 %v530, %v613
    %v654 = vmul.f32 %v531, %v617
    %v655 = vmul.f32 %v532, %v617
    %v656 = vmul.f32 %v533, %v617
    %v657 = vmul.f32 %v534, %v617
    %v658 = vmul.f32 %v535, %v621
    %v659 = vmul.f32 %v536, %v621
    %v660 = vmul.f32 %v537, %v621
    %v661 = vmul.f32 %v538, %v621
    %v662 = vmul.f32 %v539, %v625
    %v663 = vmul.f32 %v540, %v625
    %v664 = vmul.f32 %v541, %v625
    %v665 = vmul.f32 %v542, %v625
    %v666 = vmul.f32 %v543, %v629
    %v667 = vmul.f32 %v544, %v629
    %v668 = vmul.f32 %v545, %v629
    %v669 = vmul.f32 %v546, %v629
    %v670 = vmul.f32 %v547, %v633
    %v671 = vmul.f32 %v548, %v633
    %v672 = vmul.f32 %v549, %v633
    %v673 = vmul.f32 %v550, %v633
    %v674 = vmul.f32 %v551, %v637
    %v675 = vmul.f32 %v552, %v637
    %v676 = vmul.f32 %v553, %v637
    %v677 = vmul.f32 %v554, %v637
    %678 = vadd.xlane.f32.xlu0 %v646
    %v679 = vpop.xlane.xlu0 %678
    %680 = vadd.xlane.f32.xlu0 %v647
    %v681 = vpop.xlane.xlu0 %680
    %682 = vadd.xlane.f32.xlu0 %v648
    %v683 = vpop.xlane.xlu0 %682
    %684 = vadd.xlane.f32.xlu0 %v649
    %v685 = vpop.xlane.xlu0 %684
    %686 = vadd.xlane.f32.xlu0 %v650
    %v687 = vpop.xlane.xlu0 %686
    %688 = vadd.xlane.f32.xlu0 %v651
    %v689 = vpop.xlane.xlu0 %688
    %690 = vadd.xlane.f32.xlu0 %v652
    %v691 = vpop.xlane.xlu0 %690
    %692 = vadd.xlane.f32.xlu0 %v653
    %v693 = vpop.xlane.xlu0 %692
    %694 = vadd.xlane.f32.xlu0 %v654
    %v695 = vpop.xlane.xlu0 %694
    %696 = vadd.xlane.f32.xlu0 %v655
    %v697 = vpop.xlane.xlu0 %696
    %698 = vadd.xlane.f32.xlu0 %v656
    %v699 = vpop.xlane.xlu0 %698
    %700 = vadd.xlane.f32.xlu0 %v657
    %v701 = vpop.xlane.xlu0 %700
    %702 = vadd.xlane.f32.xlu0 %v658
    %v703 = vpop.xlane.xlu0 %702
    %704 = vadd.xlane.f32.xlu0 %v659
    %v705 = vpop.xlane.xlu0 %704
    %706 = vadd.xlane.f32.xlu0 %v660
    %v707 = vpop.xlane.xlu0 %706
    %708 = vadd.xlane.f32.xlu0 %v661
    %v709 = vpop.xlane.xlu0 %708
    %710 = vadd.xlane.f32.xlu0 %v662
    %v711 = vpop.xlane.xlu0 %710
    %712 = vadd.xlane.f32.xlu0 %v663
    %v713 = vpop.xlane.xlu0 %712
    %714 = vadd.xlane.f32.xlu0 %v664
    %v715 = vpop.xlane.xlu0 %714
    %716 = vadd.xlane.f32.xlu0 %v665
    %v717 = vpop.xlane.xlu0 %716
    %718 = vadd.xlane.f32.xlu0 %v666
    %v719 = vpop.xlane.xlu0 %718
    %720 = vadd.xlane.f32.xlu0 %v667
    %v721 = vpop.xlane.xlu0 %720
    %722 = vadd.xlane.f32.xlu0 %v668
    %v723 = vpop.xlane.xlu0 %722
    %724 = vadd.xlane.f32.xlu0 %v669
    %v725 = vpop.xlane.xlu0 %724
    %726 = vadd.xlane.f32.xlu0 %v670
    %v727 = vpop.xlane.xlu0 %726
    %728 = vadd.xlane.f32.xlu0 %v671
    %v729 = vpop.xlane.xlu0 %728
    %730 = vadd.xlane.f32.xlu0 %v672
    %v731 = vpop.xlane.xlu0 %730
    %732 = vadd.xlane.f32.xlu0 %v673
    %v733 = vpop.xlane.xlu0 %732
    %734 = vadd.xlane.f32.xlu0 %v674
    %v735 = vpop.xlane.xlu0 %734
    %736 = vadd.xlane.f32.xlu0 %v675
    %v737 = vpop.xlane.xlu0 %736
    %738 = vadd.xlane.f32.xlu0 %v676
    %v739 = vpop.xlane.xlu0 %738
    %740 = vadd.xlane.f32.xlu0 %v677
    %v741 = vpop.xlane.xlu0 %740
    %v742 = vadd.f32 %v679, 0.0
    %v743 = vadd.f32 %v681, 0.0
    %v744 = vadd.f32 %v683, 0.0
    %v745 = vadd.f32 %v685, 0.0
    %v746 = vadd.f32 %v687, 0.0
    %v747 = vadd.f32 %v689, 0.0
    %v748 = vadd.f32 %v691, 0.0
    %v749 = vadd.f32 %v693, 0.0
    %v750 = vadd.f32 %v695, 0.0
    %v751 = vadd.f32 %v697, 0.0
    %v752 = vadd.f32 %v699, 0.0
    %v753 = vadd.f32 %v701, 0.0
    %v754 = vadd.f32 %v703, 0.0
    %v755 = vadd.f32 %v705, 0.0
    %v756 = vadd.f32 %v707, 0.0
    %v757 = vadd.f32 %v709, 0.0
    %v758 = vadd.f32 %v711, 0.0
    %v759 = vadd.f32 %v713, 0.0
    %v760 = vadd.f32 %v715, 0.0
    %v761 = vadd.f32 %v717, 0.0
    %v762 = vadd.f32 %v719, 0.0
    %v763 = vadd.f32 %v721, 0.0
    %v764 = vadd.f32 %v723, 0.0
    %v765 = vadd.f32 %v725, 0.0
    %v766 = vadd.f32 %v727, 0.0
    %v767 = vadd.f32 %v729, 0.0
    %v768 = vadd.f32 %v731, 0.0
    %v769 = vadd.f32 %v733, 0.0
    %v770 = vadd.f32 %v735, 0.0
    %v771 = vadd.f32 %v737, 0.0
    %v772 = vadd.f32 %v739, 0.0
    %v773 = vadd.f32 %v741, 0.0
    %v806 = vadd.s32 %v347, 4294967264
    %v807 = vlaneseq
    %v808 = vshrl.u32 %v807, 7
    %v809 = vsub.s32 %v806, %v808
    %v810 = vrot.slane %v742, %v809
    %v811 = vadd.s32 %v347, 4294967256
    %v812 = vlaneseq
    %v813 = vshrl.u32 %v812, 7
    %v814 = vsub.s32 %v811, %v813
    %v815 = vrot.slane %v743, %v814
    %vm816 = vcmask 392512
    %v817 = vsel %vm816, %v815, %v810
    %v818 = vadd.s32 %v347, 4294967248
    %v819 = vlaneseq
    %v820 = vshrl.u32 %v819, 7
    %v821 = vsub.s32 %v818, %v820
    %v822 = vrot.slane %v744, %v821
    %vm823 = vcmask 458112
    %v824 = vsel %vm823, %v822, %v817
    %v825 = vadd.s32 %v347, 4294967240
    %v826 = vlaneseq
    %v827 = vshrl.u32 %v826, 7
    %v828 = vsub.s32 %v825, %v827
    %v829 = vrot.slane %v745, %v828
    %vm830 = vcmask 523712
    %v831 = vsel %vm830, %v829, %v824
    %v832 = vlaneseq
    %v833 = vshrl.u32 %v832, 7
    %v834 = vsub.s32 %v806, %v833
    %v835 = vrot.slane %v746, %v834
    %v836 = vlaneseq
    %v837 = vshrl.u32 %v836, 7
    %v838 = vsub.s32 %v811, %v837
    %v839 = vrot.slane %v747, %v838
    %v840 = vsel %vm816, %v839, %v835
    %v841 = vlaneseq
    %v842 = vshrl.u32 %v841, 7
    %v843 = vsub.s32 %v818, %v842
    %v844 = vrot.slane %v748, %v843
    %v845 = vsel %vm823, %v844, %v840
    %v846 = vlaneseq
    %v847 = vshrl.u32 %v846, 7
    %v848 = vsub.s32 %v825, %v847
    %v849 = vrot.slane %v749, %v848
    %v850 = vsel %vm830, %v849, %v845
    %v851 = vlaneseq
    %v852 = vshrl.u32 %v851, 7
    %v853 = vsub.s32 %v806, %v852
    %v854 = vrot.slane %v750, %v853
    %v855 = vlaneseq
    %v856 = vshrl.u32 %v855, 7
    %v857 = vsub.s32 %v811, %v856
    %v858 = vrot.slane %v751, %v857
    %v859 = vsel %vm816, %v858, %v854
    %v860 = vlaneseq
    %v861 = vshrl.u32 %v860, 7
    %v862 = vsub.s32 %v818, %v861
    %v863 = vrot.slane %v752, %v862
    %v864 = vsel %vm823, %v863, %v859
    %v865 = vlaneseq
    %v866 = vshrl.u32 %v865, 7
    %v867 = vsub.s32 %v825, %v866
    %v868 = vrot.slane %v753, %v867
    %v869 = vsel %vm830, %v868, %v864
    %v870 = vlaneseq
    %v871 = vshrl.u32 %v870, 7
    %v872 = vsub.s32 %v806, %v871
    %v873 = vrot.slane %v754, %v872
    %v874 = vlaneseq
    %v875 = vshrl.u32 %v874, 7
    %v876 = vsub.s32 %v811, %v875
    %v877 = vrot.slane %v755, %v876
    %v878 = vsel %vm816, %v877, %v873
    %v879 = vlaneseq
    %v880 = vshrl.u32 %v879, 7
    %v881 = vsub.s32 %v818, %v880
    %v882 = vrot.slane %v756, %v881
    %v883 = vsel %vm823, %v882, %v878
    %v884 = vlaneseq
    %v885 = vshrl.u32 %v884, 7
    %v886 = vsub.s32 %v825, %v885
    %v887 = vrot.slane %v757, %v886
    %v888 = vsel %vm830, %v887, %v883
    %v889 = vlaneseq
    %v890 = vshrl.u32 %v889, 7
    %v891 = vsub.s32 %v806, %v890
    %v892 = vrot.slane %v758, %v891
    %v893 = vlaneseq
    %v894 = vshrl.u32 %v893, 7
    %v895 = vsub.s32 %v811, %v894
    %v896 = vrot.slane %v759, %v895
    %v897 = vsel %vm816, %v896, %v892
    %v898 = vlaneseq
    %v899 = vshrl.u32 %v898, 7
    %v900 = vsub.s32 %v818, %v899
    %v901 = vrot.slane %v760, %v900
    %v902 = vsel %vm823, %v901, %v897
    %v903 = vlaneseq
    %v904 = vshrl.u32 %v903, 7
    %v905 = vsub.s32 %v825, %v904
    %v906 = vrot.slane %v761, %v905
    %v907 = vsel %vm830, %v906, %v902
    %v908 = vlaneseq
    %v909 = vshrl.u32 %v908, 7
    %v910 = vsub.s32 %v806, %v909
    %v911 = vrot.slane %v762, %v910
    %v912 = vlaneseq
    %v913 = vshrl.u32 %v912, 7
    %v914 = vsub.s32 %v811, %v913
    %v915 = vrot.slane %v763, %v914
    %v916 = vsel %vm816, %v915, %v911
    %v917 = vlaneseq
    %v918 = vshrl.u32 %v917, 7
    %v919 = vsub.s32 %v818, %v918
    %v920 = vrot.slane %v764, %v919
    %v921 = vsel %vm823, %v920, %v916
    %v922 = vlaneseq
    %v923 = vshrl.u32 %v922, 7
    %v924 = vsub.s32 %v825, %v923
    %v925 = vrot.slane %v765, %v924
    %v926 = vsel %vm830, %v925, %v921
    %v927 = vlaneseq
    %v928 = vshrl.u32 %v927, 7
    %v929 = vsub.s32 %v806, %v928
    %v930 = vrot.slane %v766, %v929
    %v931 = vlaneseq
    %v932 = vshrl.u32 %v931, 7
    %v933 = vsub.s32 %v811, %v932
    %v934 = vrot.slane %v767, %v933
    %v935 = vsel %vm816, %v934, %v930
    %v936 = vlaneseq
    %v937 = vshrl.u32 %v936, 7
    %v938 = vsub.s32 %v818, %v937
    %v939 = vrot.slane %v768, %v938
    %v940 = vsel %vm823, %v939, %v935
    %v941 = vlaneseq
    %v942 = vshrl.u32 %v941, 7
    %v943 = vsub.s32 %v825, %v942
    %v944 = vrot.slane %v769, %v943
    %v945 = vsel %vm830, %v944, %v940
    %v946 = vlaneseq
    %v947 = vshrl.u32 %v946, 7
    %v948 = vsub.s32 %v806, %v947
    %v949 = vrot.slane %v770, %v948
    %v950 = vlaneseq
    %v951 = vshrl.u32 %v950, 7
    %v952 = vsub.s32 %v811, %v951
    %v953 = vrot.slane %v771, %v952
    %v954 = vsel %vm816, %v953, %v949
    %v955 = vlaneseq
    %v956 = vshrl.u32 %v955, 7
    %v957 = vsub.s32 %v818, %v956
    %v958 = vrot.slane %v772, %v957
    %v959 = vsel %vm823, %v958, %v954
    %v960 = vlaneseq
    %v961 = vshrl.u32 %v960, 7
    %v962 = vsub.s32 %v825, %v961
    %v963 = vrot.slane %v773, %v962
    %v964 = vsel %vm830, %v963, %v959
    %v965 = vsel %vm506, %v850, %v831
    %v966 = vsel %vm508, %v869, %v965
    %v967 = vsel %vm510, %v888, %v966
    %v968 = vsel %vm512, %v907, %v967
    %v969 = vsel %vm514, %v926, %v968
    %v970 = vsel %vm516, %v945, %v969
    %v971 = vsel %vm518, %v964, %v970
    %vm973 = vcmask 523520
    %974 = vst.msk [vmem:[#allocation5] sm:$0xff] %vm973, %v971
    %v975 = vld [vmem:[#allocation7 + $0x40] sm:$0xff]
    %v976 = vld [vmem:[#allocation7 + $0x48] sm:$0xff]
    %v977 = vld [vmem:[#allocation7 + $0x50] sm:$0xff]
    %v978 = vld [vmem:[#allocation7 + $0x58] sm:$0xff]
    %v979 = vld [vmem:[#allocation7 + $0xc0] sm:$0xff]
    %v980 = vld [vmem:[#allocation7 + $0xc8] sm:$0xff]
    %v981 = vld [vmem:[#allocation7 + $0xd0] sm:$0xff]
    %v982 = vld [vmem:[#allocation7 + $0xd8] sm:$0xff]
    %v983 = vld [vmem:[#allocation7 + $0x140] sm:$0xff]
    %v984 = vld [vmem:[#allocation7 + $0x148] sm:$0xff]
    %v985 = vld [vmem:[#allocation7 + $0x150] sm:$0xff]
    %v986 = vld [vmem:[#allocation7 + $0x158] sm:$0xff]
    %v987 = vld [vmem:[#allocation7 + $0x1c0] sm:$0xff]
    %v988 = vld [vmem:[#allocation7 + $0x1c8] sm:$0xff]
    %v989 = vld [vmem:[#allocation7 + $0x1d0] sm:$0xff]
    %v990 = vld [vmem:[#allocation7 + $0x1d8] sm:$0xff]
    %v991 = vld [vmem:[#allocation7 + $0x240] sm:$0xff]
    %v992 = vld [vmem:[#allocation7 + $0x248] sm:$0xff]
    %v993 = vld [vmem:[#allocation7 + $0x250] sm:$0xff]
    %v994 = vld [vmem:[#allocation7 + $0x258] sm:$0xff]
    %v995 = vld [vmem:[#allocation7 + $0x2c0] sm:$0xff]
    %v996 = vld [vmem:[#allocation7 + $0x2c8] sm:$0xff]
    %v997 = vld [vmem:[#allocation7 + $0x2d0] sm:$0xff]
    %v998 = vld [vmem:[#allocation7 + $0x2d8] sm:$0xff]
    %v999 = vld [vmem:[#allocation7 + $0x340] sm:$0xff]
    %v1000 = vld [vmem:[#allocation7 + $0x348] sm:$0xff]
    %v1001 = vld [vmem:[#allocation7 + $0x350] sm:$0xff]
    %v1002 = vld [vmem:[#allocation7 + $0x358] sm:$0xff]
    %v1003 = vld [vmem:[#allocation7 + $0x3c0] sm:$0xff]
    %v1004 = vld [vmem:[#allocation7 + $0x3c8] sm:$0xff]
    %v1005 = vld [vmem:[#allocation7 + $0x3d0] sm:$0xff]
    %v1006 = vld [vmem:[#allocation7 + $0x3d8] sm:$0xff]
    %v1007 = vld [vmem:[#allocation10] sm:$0xff]
    %v1009 = vcombine.high %v1007, %v1007
    %v1011 = vunpack.c.l.s4 1966171168
    %v1012 = vunpack.c.0.s8 %v1011
    %v1013 = vlaneseq
    %v1014 = vshrl.u32 %v1013, 7
    %v1015 = vsub.s32 %v1012, %v1014
    %v1016 = vrot.slane %v1007, %v1015
    %v1018 = vunpack.c.l.s4 1966171168
    %v1019 = vunpack.c.0.s8 %v1018
    %v1020 = vlaneseq
    %v1021 = vshrl.u32 %v1020, 7
    %v1022 = vsub.s32 %v1019, %v1021
    %v1023 = vrot.slane %v1009, %v1022
    %v1024 = vcombine.high %v1016, %v1016
    %v1025 = vcombine.high %v1023, %v1023
    %v1027 = vunpack.c.l.s4 1966171168
    %v1028 = vunpack.c.0.s8 %v1027
    %v1029 = vlaneseq
    %v1030 = vshrl.u32 %v1029, 7
    %v1031 = vsub.s32 %v1028, %v1030
    %v1032 = vrot.slane %v1016, %v1031
    %v1034 = vunpack.c.l.s4 1966171168
    %v1035 = vunpack.c.0.s8 %v1034
    %v1036 = vlaneseq
    %v1037 = vshrl.u32 %v1036, 7
    %v1038 = vsub.s32 %v1035, %v1037
    %v1039 = vrot.slane %v1023, %v1038
    %v1041 = vunpack.c.l.s4 1966171168
    %v1042 = vunpack.c.0.s8 %v1041
    %v1043 = vlaneseq
    %v1044 = vshrl.u32 %v1043, 7
    %v1045 = vsub.s32 %v1042, %v1044
    %v1046 = vrot.slane %v1024, %v1045
    %v1048 = vunpack.c.l.s4 1966171168
    %v1049 = vunpack.c.0.s8 %v1048
    %v1050 = vlaneseq
    %v1051 = vshrl.u32 %v1050, 7
    %v1052 = vsub.s32 %v1049, %v1051
    %v1053 = vrot.slane %v1025, %v1052
    %v1054 = vcombine.high %v1032, %v1032
    %v1055 = vcombine.high %v1039, %v1039
    %v1056 = vcombine.high %v1046, %v1046
    %v1057 = vcombine.high %v1053, %v1053
    %v1058 = vlaneseq
    %v1059 = vshrl.u32 %v1058, 7
    %v1060 = vsub.s32 0, %v1059
    %v1061 = vrot.slane %v1032, %v1060
    %v1062 = vlaneseq
    %v1063 = vshrl.u32 %v1062, 7
    %v1064 = vsub.s32 0, %v1063
    %v1065 = vrot.slane %v1046, %v1064
    %v1066 = vlaneseq
    %v1067 = vshrl.u32 %v1066, 7
    %v1068 = vsub.s32 0, %v1067
    %v1069 = vrot.slane %v1054, %v1068
    %v1070 = vlaneseq
    %v1071 = vshrl.u32 %v1070, 7
    %v1072 = vsub.s32 0, %v1071
    %v1073 = vrot.slane %v1056, %v1072
    %v1074 = vlaneseq
    %v1075 = vshrl.u32 %v1074, 7
    %v1076 = vsub.s32 0, %v1075
    %v1077 = vrot.slane %v1039, %v1076
    %v1078 = vlaneseq
    %v1079 = vshrl.u32 %v1078, 7
    %v1080 = vsub.s32 0, %v1079
    %v1081 = vrot.slane %v1053, %v1080
    %v1082 = vlaneseq
    %v1083 = vshrl.u32 %v1082, 7
    %v1084 = vsub.s32 0, %v1083
    %v1085 = vrot.slane %v1055, %v1084
    %v1086 = vlaneseq
    %v1087 = vshrl.u32 %v1086, 7
    %v1088 = vsub.s32 0, %v1087
    %v1089 = vrot.slane %v1057, %v1088
    %v1098 = vmul.f32 %v975, %v1061
    %v1099 = vmul.f32 %v976, %v1061
    %v1100 = vmul.f32 %v977, %v1061
    %v1101 = vmul.f32 %v978, %v1061
    %v1102 = vmul.f32 %v979, %v1065
    %v1103 = vmul.f32 %v980, %v1065
    %v1104 = vmul.f32 %v981, %v1065
    %v1105 = vmul.f32 %v982, %v1065
    %v1106 = vmul.f32 %v983, %v1069
    %v1107 = vmul.f32 %v984, %v1069
    %v1108 = vmul.f32 %v985, %v1069
    %v1109 = vmul.f32 %v986, %v1069
    %v1110 = vmul.f32 %v987, %v1073
    %v1111 = vmul.f32 %v988, %v1073
    %v1112 = vmul.f32 %v989, %v1073
    %v1113 = vmul.f32 %v990, %v1073
    %v1114 = vmul.f32 %v991, %v1077
    %v1115 = vmul.f32 %v992, %v1077
    %v1116 = vmul.f32 %v993, %v1077
    %v1117 = vmul.f32 %v994, %v1077
    %v1118 = vmul.f32 %v995, %v1081
    %v1119 = vmul.f32 %v996, %v1081
    %v1120 = vmul.f32 %v997, %v1081
    %v1121 = vmul.f32 %v998, %v1081
    %v1122 = vmul.f32 %v999, %v1085
    %v1123 = vmul.f32 %v1000, %v1085
    %v1124 = vmul.f32 %v1001, %v1085
    %v1125 = vmul.f32 %v1002, %v1085
    %v1126 = vmul.f32 %v1003, %v1089
    %v1127 = vmul.f32 %v1004, %v1089
    %v1128 = vmul.f32 %v1005, %v1089
    %v1129 = vmul.f32 %v1006, %v1089
    %1130 = vadd.xlane.f32.xlu0 %v1098
    %v1131 = vpop.xlane.xlu0 %1130
    %1132 = vadd.xlane.f32.xlu0 %v1099
    %v1133 = vpop.xlane.xlu0 %1132
    %1134 = vadd.xlane.f32.xlu0 %v1100
    %v1135 = vpop.xlane.xlu0 %1134
    %1136 = vadd.xlane.f32.xlu0 %v1101
    %v1137 = vpop.xlane.xlu0 %1136
    %1138 = vadd.xlane.f32.xlu0 %v1102
    %v1139 = vpop.xlane.xlu0 %1138
    %1140 = vadd.xlane.f32.xlu0 %v1103
    %v1141 = vpop.xlane.xlu0 %1140
    %1142 = vadd.xlane.f32.xlu0 %v1104
    %v1143 = vpop.xlane.xlu0 %1142
    %1144 = vadd.xlane.f32.xlu0 %v1105
    %v1145 = vpop.xlane.xlu0 %1144
    %1146 = vadd.xlane.f32.xlu0 %v1106
    %v1147 = vpop.xlane.xlu0 %1146
    %1148 = vadd.xlane.f32.xlu0 %v1107
    %v1149 = vpop.xlane.xlu0 %1148
    %1150 = vadd.xlane.f32.xlu0 %v1108
    %v1151 = vpop.xlane.xlu0 %1150
    %1152 = vadd.xlane.f32.xlu0 %v1109
    %v1153 = vpop.xlane.xlu0 %1152
    %1154 = vadd.xlane.f32.xlu0 %v1110
    %v1155 = vpop.xlane.xlu0 %1154
    %1156 = vadd.xlane.f32.xlu0 %v1111
    %v1157 = vpop.xlane.xlu0 %1156
    %1158 = vadd.xlane.f32.xlu0 %v1112
    %v1159 = vpop.xlane.xlu0 %1158
    %1160 = vadd.xlane.f32.xlu0 %v1113
    %v1161 = vpop.xlane.xlu0 %1160
    %1162 = vadd.xlane.f32.xlu0 %v1114
    %v1163 = vpop.xlane.xlu0 %1162
    %1164 = vadd.xlane.f32.xlu0 %v1115
    %v1165 = vpop.xlane.xlu0 %1164
    %1166 = vadd.xlane.f32.xlu0 %v1116
    %v1167 = vpop.xlane.xlu0 %1166
    %1168 = vadd.xlane.f32.xlu0 %v1117
    %v1169 = vpop.xlane.xlu0 %1168
    %1170 = vadd.xlane.f32.xlu0 %v1118
    %v1171 = vpop.xlane.xlu0 %1170
    %1172 = vadd.xlane.f32.xlu0 %v1119
    %v1173 = vpop.xlane.xlu0 %1172
    %1174 = vadd.xlane.f32.xlu0 %v1120
    %v1175 = vpop.xlane.xlu0 %1174
    %1176 = vadd.xlane.f32.xlu0 %v1121
    %v1177 = vpop.xlane.xlu0 %1176
    %1178 = vadd.xlane.f32.xlu0 %v1122
    %v1179 = vpop.xlane.xlu0 %1178
    %1180 = vadd.xlane.f32.xlu0 %v1123
    %v1181 = vpop.xlane.xlu0 %1180
    %1182 = vadd.xlane.f32.xlu0 %v1124
    %v1183 = vpop.xlane.xlu0 %1182
    %1184 = vadd.xlane.f32.xlu0 %v1125
    %v1185 = vpop.xlane.xlu0 %1184
    %1186 = vadd.xlane.f32.xlu0 %v1126
    %v1187 = vpop.xlane.xlu0 %1186
    %1188 = vadd.xlane.f32.xlu0 %v1127
    %v1189 = vpop.xlane.xlu0 %1188
    %1190 = vadd.xlane.f32.xlu0 %v1128
    %v1191 = vpop.xlane.xlu0 %1190
    %1192 = vadd.xlane.f32.xlu0 %v1129
    %v1193 = vpop.xlane.xlu0 %1192
    %v1194 = vadd.f32 %v1131, 0.0
    %v1195 = vadd.f32 %v1133, 0.0
    %v1196 = vadd.f32 %v1135, 0.0
    %v1197 = vadd.f32 %v1137, 0.0
    %v1198 = vadd.f32 %v1139, 0.0
    %v1199 = vadd.f32 %v1141, 0.0
    %v1200 = vadd.f32 %v1143, 0.0
    %v1201 = vadd.f32 %v1145, 0.0
    %v1202 = vadd.f32 %v1147, 0.0
    %v1203 = vadd.f32 %v1149, 0.0
    %v1204 = vadd.f32 %v1151, 0.0
    %v1205 = vadd.f32 %v1153, 0.0
    %v1206 = vadd.f32 %v1155, 0.0
    %v1207 = vadd.f32 %v1157, 0.0
    %v1208 = vadd.f32 %v1159, 0.0
    %v1209 = vadd.f32 %v1161, 0.0
    %v1210 = vadd.f32 %v1163, 0.0
    %v1211 = vadd.f32 %v1165, 0.0
    %v1212 = vadd.f32 %v1167, 0.0
    %v1213 = vadd.f32 %v1169, 0.0
    %v1214 = vadd.f32 %v1171, 0.0
    %v1215 = vadd.f32 %v1173, 0.0
    %v1216 = vadd.f32 %v1175, 0.0
    %v1217 = vadd.f32 %v1177, 0.0
    %v1218 = vadd.f32 %v1179, 0.0
    %v1219 = vadd.f32 %v1181, 0.0
    %v1220 = vadd.f32 %v1183, 0.0
    %v1221 = vadd.f32 %v1185, 0.0
    %v1222 = vadd.f32 %v1187, 0.0
    %v1223 = vadd.f32 %v1189, 0.0
    %v1224 = vadd.f32 %v1191, 0.0
    %v1225 = vadd.f32 %v1193, 0.0
    %v1258 = vadd.s32 %v347, 4294967232
    %v1259 = vlaneseq
    %v1260 = vshrl.u32 %v1259, 7
    %v1261 = vsub.s32 %v1258, %v1260
    %v1262 = vrot.slane %v1194, %v1261
    %v1263 = vadd.s32 %v347, 4294967224
    %v1264 = vlaneseq
    %v1265 = vshrl.u32 %v1264, 7
    %v1266 = vsub.s32 %v1263, %v1265
    %v1267 = vrot.slane %v1195, %v1266
    %vm1268 = vcmask 654912
    %v1269 = vsel %vm1268, %v1267, %v1262
    %v1270 = vadd.s32 %v347, 4294967216
    %v1271 = vlaneseq
    %v1272 = vshrl.u32 %v1271, 7
    %v1273 = vsub.s32 %v1270, %v1272
    %v1274 = vrot.slane %v1196, %v1273
    %vm1275 = vcmask 720512
    %v1276 = vsel %vm1275, %v1274, %v1269
    %v1277 = vadd.s32 %v347, 4294967208
    %v1278 = vlaneseq
    %v1279 = vshrl.u32 %v1278, 7
    %v1280 = vsub.s32 %v1277, %v1279
    %v1281 = vrot.slane %v1197, %v1280
    %vm1282 = vcmask 786112
    %v1283 = vsel %vm1282, %v1281, %v1276
    %v1284 = vlaneseq
    %v1285 = vshrl.u32 %v1284, 7
    %v1286 = vsub.s32 %v1258, %v1285
    %v1287 = vrot.slane %v1198, %v1286
    %v1288 = vlaneseq
    %v1289 = vshrl.u32 %v1288, 7
    %v1290 = vsub.s32 %v1263, %v1289
    %v1291 = vrot.slane %v1199, %v1290
    %v1292 = vsel %vm1268, %v1291, %v1287
    %v1293 = vlaneseq
    %v1294 = vshrl.u32 %v1293, 7
    %v1295 = vsub.s32 %v1270, %v1294
    %v1296 = vrot.slane %v1200, %v1295
    %v1297 = vsel %vm1275, %v1296, %v1292
    %v1298 = vlaneseq
    %v1299 = vshrl.u32 %v1298, 7
    %v1300 = vsub.s32 %v1277, %v1299
    %v1301 = vrot.slane %v1201, %v1300
    %v1302 = vsel %vm1282, %v1301, %v1297
    %v1303 = vlaneseq
    %v1304 = vshrl.u32 %v1303, 7
    %v1305 = vsub.s32 %v1258, %v1304
    %v1306 = vrot.slane %v1202, %v1305
    %v1307 = vlaneseq
    %v1308 = vshrl.u32 %v1307, 7
    %v1309 = vsub.s32 %v1263, %v1308
    %v1310 = vrot.slane %v1203, %v1309
    %v1311 = vsel %vm1268, %v1310, %v1306
    %v1312 = vlaneseq
    %v1313 = vshrl.u32 %v1312, 7
    %v1314 = vsub.s32 %v1270, %v1313
    %v1315 = vrot.slane %v1204, %v1314
    %v1316 = vsel %vm1275, %v1315, %v1311
    %v1317 = vlaneseq
    %v1318 = vshrl.u32 %v1317, 7
    %v1319 = vsub.s32 %v1277, %v1318
    %v1320 = vrot.slane %v1205, %v1319
    %v1321 = vsel %vm1282, %v1320, %v1316
    %v1322 = vlaneseq
    %v1323 = vshrl.u32 %v1322, 7
    %v1324 = vsub.s32 %v1258, %v1323
    %v1325 = vrot.slane %v1206, %v1324
    %v1326 = vlaneseq
    %v1327 = vshrl.u32 %v1326, 7
    %v1328 = vsub.s32 %v1263, %v1327
    %v1329 = vrot.slane %v1207, %v1328
    %v1330 = vsel %vm1268, %v1329, %v1325
    %v1331 = vlaneseq
    %v1332 = vshrl.u32 %v1331, 7
    %v1333 = vsub.s32 %v1270, %v1332
    %v1334 = vrot.slane %v1208, %v1333
    %v1335 = vsel %vm1275, %v1334, %v1330
    %v1336 = vlaneseq
    %v1337 = vshrl.u32 %v1336, 7
    %v1338 = vsub.s32 %v1277, %v1337
    %v1339 = vrot.slane %v1209, %v1338
    %v1340 = vsel %vm1282, %v1339, %v1335
    %v1341 = vlaneseq
    %v1342 = vshrl.u32 %v1341, 7
    %v1343 = vsub.s32 %v1258, %v1342
    %v1344 = vrot.slane %v1210, %v1343
    %v1345 = vlaneseq
    %v1346 = vshrl.u32 %v1345, 7
    %v1347 = vsub.s32 %v1263, %v1346
    %v1348 = vrot.slane %v1211, %v1347
    %v1349 = vsel %vm1268, %v1348, %v1344
    %v1350 = vlaneseq
    %v1351 = vshrl.u32 %v1350, 7
    %v1352 = vsub.s32 %v1270, %v1351
    %v1353 = vrot.slane %v1212, %v1352
    %v1354 = vsel %vm1275, %v1353, %v1349
    %v1355 = vlaneseq
    %v1356 = vshrl.u32 %v1355, 7
    %v1357 = vsub.s32 %v1277, %v1356
    %v1358 = vrot.slane %v1213, %v1357
    %v1359 = vsel %vm1282, %v1358, %v1354
    %v1360 = vlaneseq
    %v1361 = vshrl.u32 %v1360, 7
    %v1362 = vsub.s32 %v1258, %v1361
    %v1363 = vrot.slane %v1214, %v1362
    %v1364 = vlaneseq
    %v1365 = vshrl.u32 %v1364, 7
    %v1366 = vsub.s32 %v1263, %v1365
    %v1367 = vrot.slane %v1215, %v1366
    %v1368 = vsel %vm1268, %v1367, %v1363
    %v1369 = vlaneseq
    %v1370 = vshrl.u32 %v1369, 7
    %v1371 = vsub.s32 %v1270, %v1370
    %v1372 = vrot.slane %v1216, %v1371
    %v1373 = vsel %vm1275, %v1372, %v1368
    %v1374 = vlaneseq
    %v1375 = vshrl.u32 %v1374, 7
    %v1376 = vsub.s32 %v1277, %v1375
    %v1377 = vrot.slane %v1217, %v1376
    %v1378 = vsel %vm1282, %v1377, %v1373
    %v1379 = vlaneseq
    %v1380 = vshrl.u32 %v1379, 7
    %v1381 = vsub.s32 %v1258, %v1380
    %v1382 = vrot.slane %v1218, %v1381
    %v1383 = vlaneseq
    %v1384 = vshrl.u32 %v1383, 7
    %v1385 = vsub.s32 %v1263, %v1384
    %v1386 = vrot.slane %v1219, %v1385
    %v1387 = vsel %vm1268, %v1386, %v1382
    %v1388 = vlaneseq
    %v1389 = vshrl.u32 %v1388, 7
    %v1390 = vsub.s32 %v1270, %v1389
    %v1391 = vrot.slane %v1220, %v1390
    %v1392 = vsel %vm1275, %v1391, %v1387
    %v1393 = vlaneseq
    %v1394 = vshrl.u32 %v1393, 7
    %v1395 = vsub.s32 %v1277, %v1394
    %v1396 = vrot.slane %v1221, %v1395
    %v1397 = vsel %vm1282, %v1396, %v1392
    %v1398 = vlaneseq
    %v1399 = vshrl.u32 %v1398, 7
    %v1400 = vsub.s32 %v1258, %v1399
    %v1401 = vrot.slane %v1222, %v1400
    %v1402 = vlaneseq
    %v1403 = vshrl.u32 %v1402, 7
    %v1404 = vsub.s32 %v1263, %v1403
    %v1405 = vrot.slane %v1223, %v1404
    %v1406 = vsel %vm1268, %v1405, %v1401
    %v1407 = vlaneseq
    %v1408 = vshrl.u32 %v1407, 7
    %v1409 = vsub.s32 %v1270, %v1408
    %v1410 = vrot.slane %v1224, %v1409
    %v1411 = vsel %vm1275, %v1410, %v1406
    %v1412 = vlaneseq
    %v1413 = vshrl.u32 %v1412, 7
    %v1414 = vsub.s32 %v1277, %v1413
    %v1415 = vrot.slane %v1225, %v1414
    %v1416 = vsel %vm1282, %v1415, %v1411
    %v1417 = vsel %vm506, %v1302, %v1283
    %v1418 = vsel %vm508, %v1321, %v1417
    %v1419 = vsel %vm510, %v1340, %v1418
    %v1420 = vsel %vm512, %v1359, %v1419
    %v1421 = vsel %vm514, %v1378, %v1420
    %v1422 = vsel %vm516, %v1397, %v1421
    %v1423 = vsel %vm518, %v1416, %v1422
    %vm1425 = vcmask 785920
    %1426 = vst.msk [vmem:[#allocation5] sm:$0xff] %vm1425, %v1423
    %v1427 = vld [vmem:[#allocation7 + $0x60] sm:$0xff]
    %v1428 = vld [vmem:[#allocation7 + $0x68] sm:$0xff]
    %v1429 = vld [vmem:[#allocation7 + $0x70] sm:$0xff]
    %v1430 = vld [vmem:[#allocation7 + $0x78] sm:$0xff]
    %v1431 = vld [vmem:[#allocation7 + $0xe0] sm:$0xff]
    %v1432 = vld [vmem:[#allocation7 + $0xe8] sm:$0xff]
    %v1433 = vld [vmem:[#allocation7 + $0xf0] sm:$0xff]
    %v1434 = vld [vmem:[#allocation7 + $0xf8] sm:$0xff]
    %v1435 = vld [vmem:[#allocation7 + $0x160] sm:$0xff]
    %v1436 = vld [vmem:[#allocation7 + $0x168] sm:$0xff]
    %v1437 = vld [vmem:[#allocation7 + $0x170] sm:$0xff]
    %v1438 = vld [vmem:[#allocation7 + $0x178] sm:$0xff]
    %v1439 = vld [vmem:[#allocation7 + $0x1e0] sm:$0xff]
    %v1440 = vld [vmem:[#allocation7 + $0x1e8] sm:$0xff]
    %v1441 = vld [vmem:[#allocation7 + $0x1f0] sm:$0xff]
    %v1442 = vld [vmem:[#allocation7 + $0x1f8] sm:$0xff]
    %v1443 = vld [vmem:[#allocation7 + $0x260] sm:$0xff]
    %v1444 = vld [vmem:[#allocation7 + $0x268] sm:$0xff]
    %v1445 = vld [vmem:[#allocation7 + $0x270] sm:$0xff]
    %v1446 = vld [vmem:[#allocation7 + $0x278] sm:$0xff]
    %v1447 = vld [vmem:[#allocation7 + $0x2e0] sm:$0xff]
    %v1448 = vld [vmem:[#allocation7 + $0x2e8] sm:$0xff]
    %v1449 = vld [vmem:[#allocation7 + $0x2f0] sm:$0xff]
    %v1450 = vld [vmem:[#allocation7 + $0x2f8] sm:$0xff]
    %v1451 = vld [vmem:[#allocation7 + $0x360] sm:$0xff]
    %v1452 = vld [vmem:[#allocation7 + $0x368] sm:$0xff]
    %v1453 = vld [vmem:[#allocation7 + $0x370] sm:$0xff]
    %v1454 = vld [vmem:[#allocation7 + $0x378] sm:$0xff]
    %v1455 = vld [vmem:[#allocation7 + $0x3e0] sm:$0xff]
    %v1456 = vld [vmem:[#allocation7 + $0x3e8] sm:$0xff]
    %v1457 = vld [vmem:[#allocation7 + $0x3f0] sm:$0xff]
    %v1458 = vld [vmem:[#allocation7 + $0x3f8] sm:$0xff]
    %v1459 = vld [vmem:[#allocation10] sm:$0xff]
    %v1461 = vcombine.high %v1459, %v1459
    %v1463 = vunpack.c.l.s4 1966171168
    %v1464 = vunpack.c.0.s8 %v1463
    %v1465 = vlaneseq
    %v1466 = vshrl.u32 %v1465, 7
    %v1467 = vsub.s32 %v1464, %v1466
    %v1468 = vrot.slane %v1459, %v1467
    %v1470 = vunpack.c.l.s4 1966171168
    %v1471 = vunpack.c.0.s8 %v1470
    %v1472 = vlaneseq
    %v1473 = vshrl.u32 %v1472, 7
    %v1474 = vsub.s32 %v1471, %v1473
    %v1475 = vrot.slane %v1461, %v1474
    %v1476 = vcombine.high %v1468, %v1468
    %v1477 = vcombine.high %v1475, %v1475
    %v1479 = vunpack.c.l.s4 1966171168
    %v1480 = vunpack.c.0.s8 %v1479
    %v1481 = vlaneseq
    %v1482 = vshrl.u32 %v1481, 7
    %v1483 = vsub.s32 %v1480, %v1482
    %v1484 = vrot.slane %v1468, %v1483
    %v1486 = vunpack.c.l.s4 1966171168
    %v1487 = vunpack.c.0.s8 %v1486
    %v1488 = vlaneseq
    %v1489 = vshrl.u32 %v1488, 7
    %v1490 = vsub.s32 %v1487, %v1489
    %v1491 = vrot.slane %v1475, %v1490
    %v1493 = vunpack.c.l.s4 1966171168
    %v1494 = vunpack.c.0.s8 %v1493
    %v1495 = vlaneseq
    %v1496 = vshrl.u32 %v1495, 7
    %v1497 = vsub.s32 %v1494, %v1496
    %v1498 = vrot.slane %v1476, %v1497
    %v1500 = vunpack.c.l.s4 1966171168
    %v1501 = vunpack.c.0.s8 %v1500
    %v1502 = vlaneseq
    %v1503 = vshrl.u32 %v1502, 7
    %v1504 = vsub.s32 %v1501, %v1503
    %v1505 = vrot.slane %v1477, %v1504
    %v1506 = vcombine.high %v1484, %v1484
    %v1507 = vcombine.high %v1491, %v1491
    %v1508 = vcombine.high %v1498, %v1498
    %v1509 = vcombine.high %v1505, %v1505
    %v1510 = vlaneseq
    %v1511 = vshrl.u32 %v1510, 7
    %v1512 = vsub.s32 0, %v1511
    %v1513 = vrot.slane %v1484, %v1512
    %v1514 = vlaneseq
    %v1515 = vshrl.u32 %v1514, 7
    %v1516 = vsub.s32 0, %v1515
    %v1517 = vrot.slane %v1498, %v1516
    %v1518 = vlaneseq
    %v1519 = vshrl.u32 %v1518, 7
    %v1520 = vsub.s32 0, %v1519
    %v1521 = vrot.slane %v1506, %v1520
    %v1522 = vlaneseq
    %v1523 = vshrl.u32 %v1522, 7
    %v1524 = vsub.s32 0, %v1523
    %v1525 = vrot.slane %v1508, %v1524
    %v1526 = vlaneseq
    %v1527 = vshrl.u32 %v1526, 7
    %v1528 = vsub.s32 0, %v1527
    %v1529 = vrot.slane %v1491, %v1528
    %v1530 = vlaneseq
    %v1531 = vshrl.u32 %v1530, 7
    %v1532 = vsub.s32 0, %v1531
    %v1533 = vrot.slane %v1505, %v1532
    %v1534 = vlaneseq
    %v1535 = vshrl.u32 %v1534, 7
    %v1536 = vsub.s32 0, %v1535
    %v1537 = vrot.slane %v1507, %v1536
    %v1538 = vlaneseq
    %v1539 = vshrl.u32 %v1538, 7
    %v1540 = vsub.s32 0, %v1539
    %v1541 = vrot.slane %v1509, %v1540
    %v1550 = vmul.f32 %v1427, %v1513
    %v1551 = vmul.f32 %v1428, %v1513
    %v1552 = vmul.f32 %v1429, %v1513
    %v1553 = vmul.f32 %v1430, %v1513
    %v1554 = vmul.f32 %v1431, %v1517
    %v1555 = vmul.f32 %v1432, %v1517
    %v1556 = vmul.f32 %v1433, %v1517
    %v1557 = vmul.f32 %v1434, %v1517
    %v1558 = vmul.f32 %v1435, %v1521
    %v1559 = vmul.f32 %v1436, %v1521
    %v1560 = vmul.f32 %v1437, %v1521
    %v1561 = vmul.f32 %v1438, %v1521
    %v1562 = vmul.f32 %v1439, %v1525
    %v1563 = vmul.f32 %v1440, %v1525
    %v1564 = vmul.f32 %v1441, %v1525
    %v1565 = vmul.f32 %v1442, %v1525
    %v1566 = vmul.f32 %v1443, %v1529
    %v1567 = vmul.f32 %v1444, %v1529
    %v1568 = vmul.f32 %v1445, %v1529
    %v1569 = vmul.f32 %v1446, %v1529
    %v1570 = vmul.f32 %v1447, %v1533
    %v1571 = vmul.f32 %v1448, %v1533
    %v1572 = vmul.f32 %v1449, %v1533
    %v1573 = vmul.f32 %v1450, %v1533
    %v1574 = vmul.f32 %v1451, %v1537
    %v1575 = vmul.f32 %v1452, %v1537
    %v1576 = vmul.f32 %v1453, %v1537
    %v1577 = vmul.f32 %v1454, %v1537
    %v1578 = vmul.f32 %v1455, %v1541
    %v1579 = vmul.f32 %v1456, %v1541
    %v1580 = vmul.f32 %v1457, %v1541
    %v1581 = vmul.f32 %v1458, %v1541
    %1582 = vadd.xlane.f32.xlu0 %v1550
    %v1583 = vpop.xlane.xlu0 %1582
    %1584 = vadd.xlane.f32.xlu0 %v1551
    %v1585 = vpop.xlane.xlu0 %1584
    %1586 = vadd.xlane.f32.xlu0 %v1552
    %v1587 = vpop.xlane.xlu0 %1586
    %1588 = vadd.xlane.f32.xlu0 %v1553
    %v1589 = vpop.xlane.xlu0 %1588
    %1590 = vadd.xlane.f32.xlu0 %v1554
    %v1591 = vpop.xlane.xlu0 %1590
    %1592 = vadd.xlane.f32.xlu0 %v1555
    %v1593 = vpop.xlane.xlu0 %1592
    %1594 = vadd.xlane.f32.xlu0 %v1556
    %v1595 = vpop.xlane.xlu0 %1594
    %1596 = vadd.xlane.f32.xlu0 %v1557
    %v1597 = vpop.xlane.xlu0 %1596
    %1598 = vadd.xlane.f32.xlu0 %v1558
    %v1599 = vpop.xlane.xlu0 %1598
    %1600 = vadd.xlane.f32.xlu0 %v1559
    %v1601 = vpop.xlane.xlu0 %1600
    %1602 = vadd.xlane.f32.xlu0 %v1560
    %v1603 = vpop.xlane.xlu0 %1602
    %1604 = vadd.xlane.f32.xlu0 %v1561
    %v1605 = vpop.xlane.xlu0 %1604
    %1606 = vadd.xlane.f32.xlu0 %v1562
    %v1607 = vpop.xlane.xlu0 %1606
    %1608 = vadd.xlane.f32.xlu0 %v1563
    %v1609 = vpop.xlane.xlu0 %1608
    %1610 = vadd.xlane.f32.xlu0 %v1564
    %v1611 = vpop.xlane.xlu0 %1610
    %1612 = vadd.xlane.f32.xlu0 %v1565
    %v1613 = vpop.xlane.xlu0 %1612
    %1614 = vadd.xlane.f32.xlu0 %v1566
    %v1615 = vpop.xlane.xlu0 %1614
    %1616 = vadd.xlane.f32.xlu0 %v1567
    %v1617 = vpop.xlane.xlu0 %1616
    %1618 = vadd.xlane.f32.xlu0 %v1568
    %v1619 = vpop.xlane.xlu0 %1618
    %1620 = vadd.xlane.f32.xlu0 %v1569
    %v1621 = vpop.xlane.xlu0 %1620
    %1622 = vadd.xlane.f32.xlu0 %v1570
    %v1623 = vpop.xlane.xlu0 %1622
    %1624 = vadd.xlane.f32.xlu0 %v1571
    %v1625 = vpop.xlane.xlu0 %1624
    %1626 = vadd.xlane.f32.xlu0 %v1572
    %v1627 = vpop.xlane.xlu0 %1626
    %1628 = vadd.xlane.f32.xlu0 %v1573
    %v1629 = vpop.xlane.xlu0 %1628
    %1630 = vadd.xlane.f32.xlu0 %v1574
    %v1631 = vpop.xlane.xlu0 %1630
    %1632 = vadd.xlane.f32.xlu0 %v1575
    %v1633 = vpop.xlane.xlu0 %1632
    %1634 = vadd.xlane.f32.xlu0 %v1576
    %v1635 = vpop.xlane.xlu0 %1634
    %1636 = vadd.xlane.f32.xlu0 %v1577
    %v1637 = vpop.xlane.xlu0 %1636
    %1638 = vadd.xlane.f32.xlu0 %v1578
    %v1639 = vpop.xlane.xlu0 %1638
    %1640 = vadd.xlane.f32.xlu0 %v1579
    %v1641 = vpop.xlane.xlu0 %1640
    %1642 = vadd.xlane.f32.xlu0 %v1580
    %v1643 = vpop.xlane.xlu0 %1642
    %1644 = vadd.xlane.f32.xlu0 %v1581
    %v1645 = vpop.xlane.xlu0 %1644
    %v1646 = vadd.f32 %v1583, 0.0
    %v1647 = vadd.f32 %v1585, 0.0
    %v1648 = vadd.f32 %v1587, 0.0
    %v1649 = vadd.f32 %v1589, 0.0
    %v1650 = vadd.f32 %v1591, 0.0
    %v1651 = vadd.f32 %v1593, 0.0
    %v1652 = vadd.f32 %v1595, 0.0
    %v1653 = vadd.f32 %v1597, 0.0
    %v1654 = vadd.f32 %v1599, 0.0
    %v1655 = vadd.f32 %v1601, 0.0
    %v1656 = vadd.f32 %v1603, 0.0
    %v1657 = vadd.f32 %v1605, 0.0
    %v1658 = vadd.f32 %v1607, 0.0
    %v1659 = vadd.f32 %v1609, 0.0
    %v1660 = vadd.f32 %v1611, 0.0
    %v1661 = vadd.f32 %v1613, 0.0
    %v1662 = vadd.f32 %v1615, 0.0
    %v1663 = vadd.f32 %v1617, 0.0
    %v1664 = vadd.f32 %v1619, 0.0
    %v1665 = vadd.f32 %v1621, 0.0
    %v1666 = vadd.f32 %v1623, 0.0
    %v1667 = vadd.f32 %v1625, 0.0
    %v1668 = vadd.f32 %v1627, 0.0
    %v1669 = vadd.f32 %v1629, 0.0
    %v1670 = vadd.f32 %v1631, 0.0
    %v1671 = vadd.f32 %v1633, 0.0
    %v1672 = vadd.f32 %v1635, 0.0
    %v1673 = vadd.f32 %v1637, 0.0
    %v1674 = vadd.f32 %v1639, 0.0
    %v1675 = vadd.f32 %v1641, 0.0
    %v1676 = vadd.f32 %v1643, 0.0
    %v1677 = vadd.f32 %v1645, 0.0
    %v1710 = vadd.s32 %v347, 4294967200
    %v1711 = vlaneseq
    %v1712 = vshrl.u32 %v1711, 7
    %v1713 = vsub.s32 %v1710, %v1712
    %v1714 = vrot.slane %v1646, %v1713
    %v1715 = vadd.s32 %v347, 4294967192
    %v1716 = vlaneseq
    %v1717 = vshrl.u32 %v1716, 7
    %v1718 = vsub.s32 %v1715, %v1717
    %v1719 = vrot.slane %v1647, %v1718
    %vm1720 = vcmask 917312
    %v1721 = vsel %vm1720, %v1719, %v1714
    %v1722 = vadd.s32 %v347, 4294967184
    %v1723 = vlaneseq
    %v1724 = vshrl.u32 %v1723, 7
    %v1725 = vsub.s32 %v1722, %v1724
    %v1726 = vrot.slane %v1648, %v1725
    %vm1727 = vcmask 982912
    %v1728 = vsel %vm1727, %v1726, %v1721
    %v1729 = vadd.s32 %v347, 4294967176
    %v1730 = vlaneseq
    %v1731 = vshrl.u32 %v1730, 7
    %v1732 = vsub.s32 %v1729, %v1731
    %v1733 = vrot.slane %v1649, %v1732
    %vm1734 = vcmask 1048512
    %v1735 = vsel %vm1734, %v1733, %v1728
    %v1736 = vlaneseq
    %v1737 = vshrl.u32 %v1736, 7
    %v1738 = vsub.s32 %v1710, %v1737
    %v1739 = vrot.slane %v1650, %v1738
    %v1740 = vlaneseq
    %v1741 = vshrl.u32 %v1740, 7
    %v1742 = vsub.s32 %v1715, %v1741
    %v1743 = vrot.slane %v1651, %v1742
    %v1744 = vsel %vm1720, %v1743, %v1739
    %v1745 = vlaneseq
    %v1746 = vshrl.u32 %v1745, 7
    %v1747 = vsub.s32 %v1722, %v1746
    %v1748 = vrot.slane %v1652, %v1747
    %v1749 = vsel %vm1727, %v1748, %v1744
    %v1750 = vlaneseq
    %v1751 = vshrl.u32 %v1750, 7
    %v1752 = vsub.s32 %v1729, %v1751
    %v1753 = vrot.slane %v1653, %v1752
    %v1754 = vsel %vm1734, %v1753, %v1749
    %v1755 = vlaneseq
    %v1756 = vshrl.u32 %v1755, 7
    %v1757 = vsub.s32 %v1710, %v1756
    %v1758 = vrot.slane %v1654, %v1757
    %v1759 = vlaneseq
    %v1760 = vshrl.u32 %v1759, 7
    %v1761 = vsub.s32 %v1715, %v1760
    %v1762 = vrot.slane %v1655, %v1761
    %v1763 = vsel %vm1720, %v1762, %v1758
    %v1764 = vlaneseq
    %v1765 = vshrl.u32 %v1764, 7
    %v1766 = vsub.s32 %v1722, %v1765
    %v1767 = vrot.slane %v1656, %v1766
    %v1768 = vsel %vm1727, %v1767, %v1763
    %v1769 = vlaneseq
    %v1770 = vshrl.u32 %v1769, 7
    %v1771 = vsub.s32 %v1729, %v1770
    %v1772 = vrot.slane %v1657, %v1771
    %v1773 = vsel %vm1734, %v1772, %v1768
    %v1774 = vlaneseq
    %v1775 = vshrl.u32 %v1774, 7
    %v1776 = vsub.s32 %v1710, %v1775
    %v1777 = vrot.slane %v1658, %v1776
    %v1778 = vlaneseq
    %v1779 = vshrl.u32 %v1778, 7
    %v1780 = vsub.s32 %v1715, %v1779
    %v1781 = vrot.slane %v1659, %v1780
    %v1782 = vsel %vm1720, %v1781, %v1777
    %v1783 = vlaneseq
    %v1784 = vshrl.u32 %v1783, 7
    %v1785 = vsub.s32 %v1722, %v1784
    %v1786 = vrot.slane %v1660, %v1785
    %v1787 = vsel %vm1727, %v1786, %v1782
    %v1788 = vlaneseq
    %v1789 = vshrl.u32 %v1788, 7
    %v1790 = vsub.s32 %v1729, %v1789
    %v1791 = vrot.slane %v1661, %v1790
    %v1792 = vsel %vm1734, %v1791, %v1787
    %v1793 = vlaneseq
    %v1794 = vshrl.u32 %v1793, 7
    %v1795 = vsub.s32 %v1710, %v1794
    %v1796 = vrot.slane %v1662, %v1795
    %v1797 = vlaneseq
    %v1798 = vshrl.u32 %v1797, 7
    %v1799 = vsub.s32 %v1715, %v1798
    %v1800 = vrot.slane %v1663, %v1799
    %v1801 = vsel %vm1720, %v1800, %v1796
    %v1802 = vlaneseq
    %v1803 = vshrl.u32 %v1802, 7
    %v1804 = vsub.s32 %v1722, %v1803
    %v1805 = vrot.slane %v1664, %v1804
    %v1806 = vsel %vm1727, %v1805, %v1801
    %v1807 = vlaneseq
    %v1808 = vshrl.u32 %v1807, 7
    %v1809 = vsub.s32 %v1729, %v1808
    %v1810 = vrot.slane %v1665, %v1809
    %v1811 = vsel %vm1734, %v1810, %v1806
    %v1812 = vlaneseq
    %v1813 = vshrl.u32 %v1812, 7
    %v1814 = vsub.s32 %v1710, %v1813
    %v1815 = vrot.slane %v1666, %v1814
    %v1816 = vlaneseq
    %v1817 = vshrl.u32 %v1816, 7
    %v1818 = vsub.s32 %v1715, %v1817
    %v1819 = vrot.slane %v1667, %v1818
    %v1820 = vsel %vm1720, %v1819, %v1815
    %v1821 = vlaneseq
    %v1822 = vshrl.u32 %v1821, 7
    %v1823 = vsub.s32 %v1722, %v1822
    %v1824 = vrot.slane %v1668, %v1823
    %v1825 = vsel %vm1727, %v1824, %v1820
    %v1826 = vlaneseq
    %v1827 = vshrl.u32 %v1826, 7
    %v1828 = vsub.s32 %v1729, %v1827
    %v1829 = vrot.slane %v1669, %v1828
    %v1830 = vsel %vm1734, %v1829, %v1825
    %v1831 = vlaneseq
    %v1832 = vshrl.u32 %v1831, 7
    %v1833 = vsub.s32 %v1710, %v1832
    %v1834 = vrot.slane %v1670, %v1833
    %v1835 = vlaneseq
    %v1836 = vshrl.u32 %v1835, 7
    %v1837 = vsub.s32 %v1715, %v1836
    %v1838 = vrot.slane %v1671, %v1837
    %v1839 = vsel %vm1720, %v1838, %v1834
    %v1840 = vlaneseq
    %v1841 = vshrl.u32 %v1840, 7
    %v1842 = vsub.s32 %v1722, %v1841
    %v1843 = vrot.slane %v1672, %v1842
    %v1844 = vsel %vm1727, %v1843, %v1839
    %v1845 = vlaneseq
    %v1846 = vshrl.u32 %v1845, 7
    %v1847 = vsub.s32 %v1729, %v1846
    %v1848 = vrot.slane %v1673, %v1847
    %v1849 = vsel %vm1734, %v1848, %v1844
    %v1850 = vlaneseq
    %v1851 = vshrl.u32 %v1850, 7
    %v1852 = vsub.s32 %v1710, %v1851
    %v1853 = vrot.slane %v1674, %v1852
    %v1854 = vlaneseq
    %v1855 = vshrl.u32 %v1854, 7
    %v1856 = vsub.s32 %v1715, %v1855
    %v1857 = vrot.slane %v1675, %v1856
    %v1858 = vsel %vm1720, %v1857, %v1853
    %v1859 = vlaneseq
    %v1860 = vshrl.u32 %v1859, 7
    %v1861 = vsub.s32 %v1722, %v1860
    %v1862 = vrot.slane %v1676, %v1861
    %v1863 = vsel %vm1727, %v1862, %v1858
    %v1864 = vlaneseq
    %v1865 = vshrl.u32 %v1864, 7
    %v1866 = vsub.s32 %v1729, %v1865
    %v1867 = vrot.slane %v1677, %v1866
    %v1868 = vsel %vm1734, %v1867, %v1863
    %v1869 = vsel %vm506, %v1754, %v1735
    %v1870 = vsel %vm508, %v1773, %v1869
    %v1871 = vsel %vm510, %v1792, %v1870
    %v1872 = vsel %vm512, %v1811, %v1871
    %v1873 = vsel %vm514, %v1830, %v1872
    %v1874 = vsel %vm516, %v1849, %v1873
    %v1875 = vsel %vm518, %v1868, %v1874
    %vm1877 = vcmask 1048320
    %1878 = vst.msk [vmem:[#allocation5] sm:$0xff] %vm1877, %v1875
    %v1879 = vld [vmem:[#allocation5] sm:$0xff]
    %v1880 = vld [vmem:[#allocation12] sm:$0xff]
    %v1881 = vadd.f32 %v1879, %v1880
    %s1882 = smul.u32 0, 8
    %s1883 = scalar_lea.vmem [#allocation6], %s1882
    %1884 = vst [vmem:[%s1883] sm:$0xff] %v1881
    %v1885 = vld [vmem:[#allocation2] sm:$0xff]
    %1886 = vmax.xlane.f32.xlu0 %v1881
    %v1887 = vpop.xlane.xlu0 %1886
    %v1888 = vmax.f32 %v1885, %v1887
    %v1889 = vsub.f32 %v1885, %v1888
    %v1890 = vmul.f32 %v1889, 1.442695
    %v1891 = vpow.pop %v1890
    %1893 = vset.pattern.permute.xlu0 0
    %1894 = vperm.xlu0 %1893, %v1888
    %v1895 = vpop.permute.xlu0 %1894
    %v1897 = vsub.f32 %v1881, %v1895
    %v1898 = vmul.f32 %v1897, 1.442695
    %v1899 = vpow.pop %v1898
    %1900 = vst [vmem:[#allocation5] sm:$0xff] %v1899
    %v1901 = vld [vmem:[#allocation3] sm:$0xff]
    %v1902 = vmul.f32 %v1891, %v1901
    %1903 = vadd.xlane.f32.xlu0 %v1899
    %v1904 = vpop.xlane.xlu0 %1903
    %v1905 = vadd.f32 %v1902, %v1904
    %vm1906 = vcmask 7168
    %1907 = vst.msk [vmem:[#allocation3] sm:$0xff] %vm1906, %v1905
    %1908 = vst.msk [vmem:[#allocation2] sm:$0xff] %vm1906, %v1888
    %v1909 = vld [vmem:[#allocation5] sm:$0xff]
    %v1910 = vld [vmem:[#allocation7] sm:$0xff]
    %v1911 = vld [vmem:[#allocation7 + $0x8] sm:$0xff]
    %v1912 = vld [vmem:[#allocation7 + $0x10] sm:$0xff]
    %v1913 = vld [vmem:[#allocation7 + $0x18] sm:$0xff]
    %v1914 = vld [vmem:[#allocation7 + $0x80] sm:$0xff]
    %v1915 = vld [vmem:[#allocation7 + $0x88] sm:$0xff]
    %v1916 = vld [vmem:[#allocation7 + $0x90] sm:$0xff]
    %v1917 = vld [vmem:[#allocation7 + $0x98] sm:$0xff]
    %v1918 = vld [vmem:[#allocation7 + $0x100] sm:$0xff]
    %v1919 = vld [vmem:[#allocation7 + $0x108] sm:$0xff]
    %v1920 = vld [vmem:[#allocation7 + $0x110] sm:$0xff]
    %v1921 = vld [vmem:[#allocation7 + $0x118] sm:$0xff]
    %v1922 = vld [vmem:[#allocation7 + $0x180] sm:$0xff]
    %v1923 = vld [vmem:[#allocation7 + $0x188] sm:$0xff]
    %v1924 = vld [vmem:[#allocation7 + $0x190] sm:$0xff]
    %v1925 = vld [vmem:[#allocation7 + $0x198] sm:$0xff]
    %v1926 = vld [vmem:[#allocation7 + $0x200] sm:$0xff]
    %v1927 = vld [vmem:[#allocation7 + $0x208] sm:$0xff]
    %v1928 = vld [vmem:[#allocation7 + $0x210] sm:$0xff]
    %v1929 = vld [vmem:[#allocation7 + $0x218] sm:$0xff]
    %v1930 = vld [vmem:[#allocation7 + $0x280] sm:$0xff]
    %v1931 = vld [vmem:[#allocation7 + $0x288] sm:$0xff]
    %v1932 = vld [vmem:[#allocation7 + $0x290] sm:$0xff]
    %v1933 = vld [vmem:[#allocation7 + $0x298] sm:$0xff]
    %v1934 = vld [vmem:[#allocation7 + $0x300] sm:$0xff]
    %v1935 = vld [vmem:[#allocation7 + $0x308] sm:$0xff]
    %v1936 = vld [vmem:[#allocation7 + $0x310] sm:$0xff]
    %v1937 = vld [vmem:[#allocation7 + $0x318] sm:$0xff]
    %v1938 = vld [vmem:[#allocation7 + $0x380] sm:$0xff]
    %v1939 = vld [vmem:[#allocation7 + $0x388] sm:$0xff]
    %v1940 = vld [vmem:[#allocation7 + $0x390] sm:$0xff]
    %v1941 = vld [vmem:[#allocation7 + $0x398] sm:$0xff]
    %v1942 = vlaneseq
    %v1943 = vshrl.u32 %v1942, 7
    %v1944 = vsub.s32 0, %v1943
    %v1945 = vrot.slane %v1909, %v1944
    %1947 = vbcast.lane.b32.xlu0 %v1945, 256
    %v1948 = vpop.permute.xlu0 %1947
    %s1950 = sor.u32 256, 8
    %1951 = vbcast.lane.b32.xlu0 %v1945, %s1950
    %v1952 = vpop.permute.xlu0 %1951
    %s1954 = sor.u32 256, 16
    %1955 = vbcast.lane.b32.xlu0 %v1945, %s1954
    %v1956 = vpop.permute.xlu0 %1955
    %s1958 = sor.u32 256, 24
    %1959 = vbcast.lane.b32.xlu0 %v1945, %s1958
    %v1960 = vpop.permute.xlu0 %1959
    %v1961 = vlaneseq
    %v1962 = vshrl.u32 %v1961, 7
    %v1963 = vsub.s32 1, %v1962
    %v1964 = vrot.slane %v1909, %v1963
    %1966 = vbcast.lane.b32.xlu0 %v1964, 256
    %v1967 = vpop.permute.xlu0 %1966
    %s1969 = sor.u32 256, 8
    %1970 = vbcast.lane.b32.xlu0 %v1964, %s1969
    %v1971 = vpop.permute.xlu0 %1970
    %s1973 = sor.u32 256, 16
    %1974 = vbcast.lane.b32.xlu0 %v1964, %s1973
    %v1975 = vpop.permute.xlu0 %1974
    %s1977 = sor.u32 256, 24
    %1978 = vbcast.lane.b32.xlu0 %v1964, %s1977
    %v1979 = vpop.permute.xlu0 %1978
    %v1980 = vlaneseq
    %v1981 = vshrl.u32 %v1980, 7
    %v1982 = vsub.s32 2, %v1981
    %v1983 = vrot.slane %v1909, %v1982
    %1985 = vbcast.lane.b32.xlu0 %v1983, 256
    %v1986 = vpop.permute.xlu0 %1985
    %s1988 = sor.u32 256, 8
    %1989 = vbcast.lane.b32.xlu0 %v1983, %s1988
    %v1990 = vpop.permute.xlu0 %1989
    %s1992 = sor.u32 256, 16
    %1993 = vbcast.lane.b32.xlu0 %v1983, %s1992
    %v1994 = vpop.permute.xlu0 %1993
    %s1996 = sor.u32 256, 24
    %1997 = vbcast.lane.b32.xlu0 %v1983, %s1996
    %v1998 = vpop.permute.xlu0 %1997
    %v1999 = vlaneseq
    %v2000 = vshrl.u32 %v1999, 7
    %v2001 = vsub.s32 3, %v2000
    %v2002 = vrot.slane %v1909, %v2001
    %2004 = vbcast.lane.b32.xlu0 %v2002, 256
    %v2005 = vpop.permute.xlu0 %2004
    %s2007 = sor.u32 256, 8
    %2008 = vbcast.lane.b32.xlu0 %v2002, %s2007
    %v2009 = vpop.permute.xlu0 %2008
    %s2011 = sor.u32 256, 16
    %2012 = vbcast.lane.b32.xlu0 %v2002, %s2011
    %v2013 = vpop.permute.xlu0 %2012
    %s2015 = sor.u32 256, 24
    %2016 = vbcast.lane.b32.xlu0 %v2002, %s2015
    %v2017 = vpop.permute.xlu0 %2016
    %v2018 = vlaneseq
    %v2019 = vshrl.u32 %v2018, 7
    %v2020 = vsub.s32 4, %v2019
    %v2021 = vrot.slane %v1909, %v2020
    %2023 = vbcast.lane.b32.xlu0 %v2021, 256
    %v2024 = vpop.permute.xlu0 %2023
    %s2026 = sor.u32 256, 8
    %2027 = vbcast.lane.b32.xlu0 %v2021, %s2026
    %v2028 = vpop.permute.xlu0 %2027
    %s2030 = sor.u32 256, 16
    %2031 = vbcast.lane.b32.xlu0 %v2021, %s2030
    %v2032 = vpop.permute.xlu0 %2031
    %s2034 = sor.u32 256, 24
    %2035 = vbcast.lane.b32.xlu0 %v2021, %s2034
    %v2036 = vpop.permute.xlu0 %2035
    %v2037 = vlaneseq
    %v2038 = vshrl.u32 %v2037, 7
    %v2039 = vsub.s32 5, %v2038
    %v2040 = vrot.slane %v1909, %v2039
    %2042 = vbcast.lane.b32.xlu0 %v2040, 256
    %v2043 = vpop.permute.xlu0 %2042
    %s2045 = sor.u32 256, 8
    %2046 = vbcast.lane.b32.xlu0 %v2040, %s2045
    %v2047 = vpop.permute.xlu0 %2046
    %s2049 = sor.u32 256, 16
    %2050 = vbcast.lane.b32.xlu0 %v2040, %s2049
    %v2051 = vpop.permute.xlu0 %2050
    %s2053 = sor.u32 256, 24
    %2054 = vbcast.lane.b32.xlu0 %v2040, %s2053
    %v2055 = vpop.permute.xlu0 %2054
    %v2056 = vlaneseq
    %v2057 = vshrl.u32 %v2056, 7
    %v2058 = vsub.s32 6, %v2057
    %v2059 = vrot.slane %v1909, %v2058
    %2061 = vbcast.lane.b32.xlu0 %v2059, 256
    %v2062 = vpop.permute.xlu0 %2061
    %s2064 = sor.u32 256, 8
    %2065 = vbcast.lane.b32.xlu0 %v2059, %s2064
    %v2066 = vpop.permute.xlu0 %2065
    %s2068 = sor.u32 256, 16
    %2069 = vbcast.lane.b32.xlu0 %v2059, %s2068
    %v2070 = vpop.permute.xlu0 %2069
    %s2072 = sor.u32 256, 24
    %2073 = vbcast.lane.b32.xlu0 %v2059, %s2072
    %v2074 = vpop.permute.xlu0 %2073
    %v2075 = vlaneseq
    %v2076 = vshrl.u32 %v2075, 7
    %v2077 = vsub.s32 7, %v2076
    %v2078 = vrot.slane %v1909, %v2077
    %2080 = vbcast.lane.b32.xlu0 %v2078, 256
    %v2081 = vpop.permute.xlu0 %2080
    %s2083 = sor.u32 256, 8
    %2084 = vbcast.lane.b32.xlu0 %v2078, %s2083
    %v2085 = vpop.permute.xlu0 %2084
    %s2087 = sor.u32 256, 16
    %2088 = vbcast.lane.b32.xlu0 %v2078, %s2087
    %v2089 = vpop.permute.xlu0 %2088
    %s2091 = sor.u32 256, 24
    %2092 = vbcast.lane.b32.xlu0 %v2078, %s2091
    %v2093 = vpop.permute.xlu0 %2092
    %v2094 = vmul.f32 %v1948, %v1910
    %v2095 = vmul.f32 %v1952, %v1911
    %v2096 = vmul.f32 %v1956, %v1912
    %v2097 = vmul.f32 %v1960, %v1913
    %v2098 = vmul.f32 %v1967, %v1914
    %v2099 = vmul.f32 %v1971, %v1915
    %v2100 = vmul.f32 %v1975, %v1916
    %v2101 = vmul.f32 %v1979, %v1917
    %v2102 = vmul.f32 %v1986, %v1918
    %v2103 = vmul.f32 %v1990, %v1919
    %v2104 = vmul.f32 %v1994, %v1920
    %v2105 = vmul.f32 %v1998, %v1921
    %v2106 = vmul.f32 %v2005, %v1922
    %v2107 = vmul.f32 %v2009, %v1923
    %v2108 = vmul.f32 %v2013, %v1924
    %v2109 = vmul.f32 %v2017, %v1925
    %v2110 = vmul.f32 %v2024, %v1926
    %v2111 = vmul.f32 %v2028, %v1927
    %v2112 = vmul.f32 %v2032, %v1928
    %v2113 = vmul.f32 %v2036, %v1929
    %v2114 = vmul.f32 %v2043, %v1930
    %v2115 = vmul.f32 %v2047, %v1931
    %v2116 = vmul.f32 %v2051, %v1932
    %v2117 = vmul.f32 %v2055, %v1933
    %v2118 = vmul.f32 %v2062, %v1934
    %v2119 = vmul.f32 %v2066, %v1935
    %v2120 = vmul.f32 %v2070, %v1936
    %v2121 = vmul.f32 %v2074, %v1937
    %v2122 = vmul.f32 %v2081, %v1938
    %v2123 = vmul.f32 %v2085, %v1939
    %v2124 = vmul.f32 %v2089, %v1940
    %v2125 = vmul.f32 %v2093, %v1941
    %v2126 = vadd.f32 %v2094, %v2095
    %v2127 = vadd.f32 %v2126, %v2096
    %v2128 = vadd.f32 %v2127, %v2097
    %v2129 = vrot.slane %v2128, 4
    %v2130 = vadd.f32 %v2128, %v2129
    %v2131 = vrot.slane %v2130, 2
    %v2132 = vadd.f32 %v2130, %v2131
    %v2133 = vrot.slane %v2132, 1
    %v2134 = vadd.f32 %v2132, %v2133
    %v2135 = vadd.f32 %v2098, %v2099
    %v2136 = vadd.f32 %v2135, %v2100
    %v2137 = vadd.f32 %v2136, %v2101
    %v2138 = vrot.slane %v2137, 4
    %v2139 = vadd.f32 %v2137, %v2138
    %v2140 = vrot.slane %v2139, 2
    %v2141 = vadd.f32 %v2139, %v2140
    %v2142 = vrot.slane %v2141, 1
    %v2143 = vadd.f32 %v2141, %v2142
    %v2144 = vadd.f32 %v2102, %v2103
    %v2145 = vadd.f32 %v2144, %v2104
    %v2146 = vadd.f32 %v2145, %v2105
    %v2147 = vrot.slane %v2146, 4
    %v2148 = vadd.f32 %v2146, %v2147
    %v2149 = vrot.slane %v2148, 2
    %v2150 = vadd.f32 %v2148, %v2149
    %v2151 = vrot.slane %v2150, 1
    %v2152 = vadd.f32 %v2150, %v2151
    %v2153 = vadd.f32 %v2106, %v2107
    %v2154 = vadd.f32 %v2153, %v2108
    %v2155 = vadd.f32 %v2154, %v2109
    %v2156 = vrot.slane %v2155, 4
    %v2157 = vadd.f32 %v2155, %v2156
    %v2158 = vrot.slane %v2157, 2
    %v2159 = vadd.f32 %v2157, %v2158
    %v2160 = vrot.slane %v2159, 1
    %v2161 = vadd.f32 %v2159, %v2160
    %v2162 = vadd.f32 %v2110, %v2111
    %v2163 = vadd.f32 %v2162, %v2112
    %v2164 = vadd.f32 %v2163, %v2113
    %v2165 = vrot.slane %v2164, 4
    %v2166 = vadd.f32 %v2164, %v2165
    %v2167 = vrot.slane %v2166, 2
    %v2168 = vadd.f32 %v2166, %v2167
    %v2169 = vrot.slane %v2168, 1
    %v2170 = vadd.f32 %v2168, %v2169
    %v2171 = vadd.f32 %v2114, %v2115
    %v2172 = vadd.f32 %v2171, %v2116
    %v2173 = vadd.f32 %v2172, %v2117
    %v2174 = vrot.slane %v2173, 4
    %v2175 = vadd.f32 %v2173, %v2174
    %v2176 = vrot.slane %v2175, 2
    %v2177 = vadd.f32 %v2175, %v2176
    %v2178 = vrot.slane %v2177, 1
    %v2179 = vadd.f32 %v2177, %v2178
    %v2180 = vadd.f32 %v2118, %v2119
    %v2181 = vadd.f32 %v2180, %v2120
    %v2182 = vadd.f32 %v2181, %v2121
    %v2183 = vrot.slane %v2182, 4
    %v2184 = vadd.f32 %v2182, %v2183
    %v2185 = vrot.slane %v2184, 2
    %v2186 = vadd.f32 %v2184, %v2185
    %v2187 = vrot.slane %v2186, 1
    %v2188 = vadd.f32 %v2186, %v2187
    %v2189 = vadd.f32 %v2122, %v2123
    %v2190 = vadd.f32 %v2189, %v2124
    %v2191 = vadd.f32 %v2190, %v2125
    %v2192 = vrot.slane %v2191, 4
    %v2193 = vadd.f32 %v2191, %v2192
    %v2194 = vrot.slane %v2193, 2
    %v2195 = vadd.f32 %v2193, %v2194
    %v2196 = vrot.slane %v2195, 1
    %v2197 = vadd.f32 %v2195, %v2196
    %v2198 = vadd.f32 %v2134, 0.0
    %v2199 = vadd.f32 %v2143, 0.0
    %v2200 = vadd.f32 %v2152, 0.0
    %v2201 = vadd.f32 %v2161, 0.0
    %v2202 = vadd.f32 %v2170, 0.0
    %v2203 = vadd.f32 %v2179, 0.0
    %v2204 = vadd.f32 %v2188, 0.0
    %v2205 = vadd.f32 %v2197, 0.0
    %v2206 = vld [vmem:[#allocation7 + $0x20] sm:$0xff]
    %v2207 = vld [vmem:[#allocation7 + $0x28] sm:$0xff]
    %v2208 = vld [vmem:[#allocation7 + $0x30] sm:$0xff]
    %v2209 = vld [vmem:[#allocation7 + $0x38] sm:$0xff]
    %v2210 = vld [vmem:[#allocation7 + $0xa0] sm:$0xff]
    %v2211 = vld [vmem:[#allocation7 + $0xa8] sm:$0xff]
    %v2212 = vld [vmem:[#allocation7 + $0xb0] sm:$0xff]
    %v2213 = vld [vmem:[#allocation7 + $0xb8] sm:$0xff]
    %v2214 = vld [vmem:[#allocation7 + $0x120] sm:$0xff]
    %v2215 = vld [vmem:[#allocation7 + $0x128] sm:$0xff]
    %v2216 = vld [vmem:[#allocation7 + $0x130] sm:$0xff]
    %v2217 = vld [vmem:[#allocation7 + $0x138] sm:$0xff]
    %v2218 = vld [vmem:[#allocation7 + $0x1a0] sm:$0xff]
    %v2219 = vld [vmem:[#allocation7 + $0x1a8] sm:$0xff]
    %v2220 = vld [vmem:[#allocation7 + $0x1b0] sm:$0xff]
    %v2221 = vld [vmem:[#allocation7 + $0x1b8] sm:$0xff]
    %v2222 = vld [vmem:[#allocation7 + $0x220] sm:$0xff]
    %v2223 = vld [vmem:[#allocation7 + $0x228] sm:$0xff]
    %v2224 = vld [vmem:[#allocation7 + $0x230] sm:$0xff]
    %v2225 = vld [vmem:[#allocation7 + $0x238] sm:$0xff]
    %v2226 = vld [vmem:[#allocation7 + $0x2a0] sm:$0xff]
    %v2227 = vld [vmem:[#allocation7 + $0x2a8] sm:$0xff]
    %v2228 = vld [vmem:[#allocation7 + $0x2b0] sm:$0xff]
    %v2229 = vld [vmem:[#allocation7 + $0x2b8] sm:$0xff]
    %v2230 = vld [vmem:[#allocation7 + $0x320] sm:$0xff]
    %v2231 = vld [vmem:[#allocation7 + $0x328] sm:$0xff]
    %v2232 = vld [vmem:[#allocation7 + $0x330] sm:$0xff]
    %v2233 = vld [vmem:[#allocation7 + $0x338] sm:$0xff]
    %v2234 = vld [vmem:[#allocation7 + $0x3a0] sm:$0xff]
    %v2235 = vld [vmem:[#allocation7 + $0x3a8] sm:$0xff]
    %v2236 = vld [vmem:[#allocation7 + $0x3b0] sm:$0xff]
    %v2237 = vld [vmem:[#allocation7 + $0x3b8] sm:$0xff]
    %s2239 = sor.u32 256, 32
    %2240 = vbcast.lane.b32.xlu0 %v1945, %s2239
    %v2241 = vpop.permute.xlu0 %2240
    %s2243 = sor.u32 256, 40
    %2244 = vbcast.lane.b32.xlu0 %v1945, %s2243
    %v2245 = vpop.permute.xlu0 %2244
    %s2247 = sor.u32 256, 48
    %2248 = vbcast.lane.b32.xlu0 %v1945, %s2247
    %v2249 = vpop.permute.xlu0 %2248
    %s2251 = sor.u32 256, 56
    %2252 = vbcast.lane.b32.xlu0 %v1945, %s2251
    %v2253 = vpop.permute.xlu0 %2252
    %s2255 = sor.u32 256, 32
    %2256 = vbcast.lane.b32.xlu0 %v1964, %s2255
    %v2257 = vpop.permute.xlu0 %2256
    %s2259 = sor.u32 256, 40
    %2260 = vbcast.lane.b32.xlu0 %v1964, %s2259
    %v2261 = vpop.permute.xlu0 %2260
    %s2263 = sor.u32 256, 48
    %2264 = vbcast.lane.b32.xlu0 %v1964, %s2263
    %v2265 = vpop.permute.xlu0 %2264
    %s2267 = sor.u32 256, 56
    %2268 = vbcast.lane.b32.xlu0 %v1964, %s2267
    %v2269 = vpop.permute.xlu0 %2268
    %s2271 = sor.u32 256, 32
    %2272 = vbcast.lane.b32.xlu0 %v1983, %s2271
    %v2273 = vpop.permute.xlu0 %2272
    %s2275 = sor.u32 256, 40
    %2276 = vbcast.lane.b32.xlu0 %v1983, %s2275
    %v2277 = vpop.permute.xlu0 %2276
    %s2279 = sor.u32 256, 48
    %2280 = vbcast.lane.b32.xlu0 %v1983, %s2279
    %v2281 = vpop.permute.xlu0 %2280
    %s2283 = sor.u32 256, 56
    %2284 = vbcast.lane.b32.xlu0 %v1983, %s2283
    %v2285 = vpop.permute.xlu0 %2284
    %s2287 = sor.u32 256, 32
    %2288 = vbcast.lane.b32.xlu0 %v2002, %s2287
    %v2289 = vpop.permute.xlu0 %2288
    %s2291 = sor.u32 256, 40
    %2292 = vbcast.lane.b32.xlu0 %v2002, %s2291
    %v2293 = vpop.permute.xlu0 %2292
    %s2295 = sor.u32 256, 48
    %2296 = vbcast.lane.b32.xlu0 %v2002, %s2295
    %v2297 = vpop.permute.xlu0 %2296
    %s2299 = sor.u32 256, 56
    %2300 = vbcast.lane.b32.xlu0 %v2002, %s2299
    %v2301 = vpop.permute.xlu0 %2300
    %s2303 = sor.u32 256, 32
    %2304 = vbcast.lane.b32.xlu0 %v2021, %s2303
    %v2305 = vpop.permute.xlu0 %2304
    %s2307 = sor.u32 256, 40
    %2308 = vbcast.lane.b32.xlu0 %v2021, %s2307
    %v2309 = vpop.permute.xlu0 %2308
    %s2311 = sor.u32 256, 48
    %2312 = vbcast.lane.b32.xlu0 %v2021, %s2311
    %v2313 = vpop.permute.xlu0 %2312
    %s2315 = sor.u32 256, 56
    %2316 = vbcast.lane.b32.xlu0 %v2021, %s2315
    %v2317 = vpop.permute.xlu0 %2316
    %s2319 = sor.u32 256, 32
    %2320 = vbcast.lane.b32.xlu0 %v2040, %s2319
    %v2321 = vpop.permute.xlu0 %2320
    %s2323 = sor.u32 256, 40
    %2324 = vbcast.lane.b32.xlu0 %v2040, %s2323
    %v2325 = vpop.permute.xlu0 %2324
    %s2327 = sor.u32 256, 48
    %2328 = vbcast.lane.b32.xlu0 %v2040, %s2327
    %v2329 = vpop.permute.xlu0 %2328
    %s2331 = sor.u32 256, 56
    %2332 = vbcast.lane.b32.xlu0 %v2040, %s2331
    %v2333 = vpop.permute.xlu0 %2332
    %s2335 = sor.u32 256, 32
    %2336 = vbcast.lane.b32.xlu0 %v2059, %s2335
    %v2337 = vpop.permute.xlu0 %2336
    %s2339 = sor.u32 256, 40
    %2340 = vbcast.lane.b32.xlu0 %v2059, %s2339
    %v2341 = vpop.permute.xlu0 %2340
    %s2343 = sor.u32 256, 48
    %2344 = vbcast.lane.b32.xlu0 %v2059, %s2343
    %v2345 = vpop.permute.xlu0 %2344
    %s2347 = sor.u32 256, 56
    %2348 = vbcast.lane.b32.xlu0 %v2059, %s2347
    %v2349 = vpop.permute.xlu0 %2348
    %s2351 = sor.u32 256, 32
    %2352 = vbcast.lane.b32.xlu0 %v2078, %s2351
    %v2353 = vpop.permute.xlu0 %2352
    %s2355 = sor.u32 256, 40
    %2356 = vbcast.lane.b32.xlu0 %v2078, %s2355
    %v2357 = vpop.permute.xlu0 %2356
    %s2359 = sor.u32 256, 48
    %2360 = vbcast.lane.b32.xlu0 %v2078, %s2359
    %v2361 = vpop.permute.xlu0 %2360
    %s2363 = sor.u32 256, 56
    %2364 = vbcast.lane.b32.xlu0 %v2078, %s2363
    %v2365 = vpop.permute.xlu0 %2364
    %v2366 = vmul.f32 %v2241, %v2206
    %v2367 = vmul.f32 %v2245, %v2207
    %v2368 = vmul.f32 %v2249, %v2208
    %v2369 = vmul.f32 %v2253, %v2209
    %v2370 = vmul.f32 %v2257, %v2210
    %v2371 = vmul.f32 %v2261, %v2211
    %v2372 = vmul.f32 %v2265, %v2212
    %v2373 = vmul.f32 %v2269, %v2213
    %v2374 = vmul.f32 %v2273, %v2214
    %v2375 = vmul.f32 %v2277, %v2215
    %v2376 = vmul.f32 %v2281, %v2216
    %v2377 = vmul.f32 %v2285, %v2217
    %v2378 = vmul.f32 %v2289, %v2218
    %v2379 = vmul.f32 %v2293, %v2219
    %v2380 = vmul.f32 %v2297, %v2220
    %v2381 = vmul.f32 %v2301, %v2221
    %v2382 = vmul.f32 %v2305, %v2222
    %v2383 = vmul.f32 %v2309, %v2223
    %v2384 = vmul.f32 %v2313, %v2224
    %v2385 = vmul.f32 %v2317, %v2225
    %v2386 = vmul.f32 %v2321, %v2226
    %v2387 = vmul.f32 %v2325, %v2227
    %v2388 = vmul.f32 %v2329, %v2228
    %v2389 = vmul.f32 %v2333, %v2229
    %v2390 = vmul.f32 %v2337, %v2230
    %v2391 = vmul.f32 %v2341, %v2231
    %v2392 = vmul.f32 %v2345, %v2232
    %v2393 = vmul.f32 %v2349, %v2233
    %v2394 = vmul.f32 %v2353, %v2234
    %v2395 = vmul.f32 %v2357, %v2235
    %v2396 = vmul.f32 %v2361, %v2236
    %v2397 = vmul.f32 %v2365, %v2237
    %v2398 = vadd.f32 %v2366, %v2367
    %v2399 = vadd.f32 %v2398, %v2368
    %v2400 = vadd.f32 %v2399, %v2369
    %v2401 = vrot.slane %v2400, 4
    %v2402 = vadd.f32 %v2400, %v2401
    %v2403 = vrot.slane %v2402, 2
    %v2404 = vadd.f32 %v2402, %v2403
    %v2405 = vrot.slane %v2404, 1
    %v2406 = vadd.f32 %v2404, %v2405
    %v2407 = vadd.f32 %v2370, %v2371
    %v2408 = vadd.f32 %v2407, %v2372
    %v2409 = vadd.f32 %v2408, %v2373
    %v2410 = vrot.slane %v2409, 4
    %v2411 = vadd.f32 %v2409, %v2410
    %v2412 = vrot.slane %v2411, 2
    %v2413 = vadd.f32 %v2411, %v2412
    %v2414 = vrot.slane %v2413, 1
    %v2415 = vadd.f32 %v2413, %v2414
    %v2416 = vadd.f32 %v2374, %v2375
    %v2417 = vadd.f32 %v2416, %v2376
    %v2418 = vadd.f32 %v2417, %v2377
    %v2419 = vrot.slane %v2418, 4
    %v2420 = vadd.f32 %v2418, %v2419
    %v2421 = vrot.slane %v2420, 2
    %v2422 = vadd.f32 %v2420, %v2421
    %v2423 = vrot.slane %v2422, 1
    %v2424 = vadd.f32 %v2422, %v2423
    %v2425 = vadd.f32 %v2378, %v2379
    %v2426 = vadd.f32 %v2425, %v2380
    %v2427 = vadd.f32 %v2426, %v2381
    %v2428 = vrot.slane %v2427, 4
    %v2429 = vadd.f32 %v2427, %v2428
    %v2430 = vrot.slane %v2429, 2
    %v2431 = vadd.f32 %v2429, %v2430
    %v2432 = vrot.slane %v2431, 1
    %v2433 = vadd.f32 %v2431, %v2432
    %v2434 = vadd.f32 %v2382, %v2383
    %v2435 = vadd.f32 %v2434, %v2384
    %v2436 = vadd.f32 %v2435, %v2385
    %v2437 = vrot.slane %v2436, 4
    %v2438 = vadd.f32 %v2436, %v2437
    %v2439 = vrot.slane %v2438, 2
    %v2440 = vadd.f32 %v2438, %v2439
    %v2441 = vrot.slane %v2440, 1
    %v2442 = vadd.f32 %v2440, %v2441
    %v2443 = vadd.f32 %v2386, %v2387
    %v2444 = vadd.f32 %v2443, %v2388
    %v2445 = vadd.f32 %v2444, %v2389
    %v2446 = vrot.slane %v2445, 4
    %v2447 = vadd.f32 %v2445, %v2446
    %v2448 = vrot.slane %v2447, 2
    %v2449 = vadd.f32 %v2447, %v2448
    %v2450 = vrot.slane %v2449, 1
    %v2451 = vadd.f32 %v2449, %v2450
    %v2452 = vadd.f32 %v2390, %v2391
    %v2453 = vadd.f32 %v2452, %v2392
    %v2454 = vadd.f32 %v2453, %v2393
    %v2455 = vrot.slane %v2454, 4
    %v2456 = vadd.f32 %v2454, %v2455
    %v2457 = vrot.slane %v2456, 2
    %v2458 = vadd.f32 %v2456, %v2457
    %v2459 = vrot.slane %v2458, 1
    %v2460 = vadd.f32 %v2458, %v2459
    %v2461 = vadd.f32 %v2394, %v2395
    %v2462 = vadd.f32 %v2461, %v2396
    %v2463 = vadd.f32 %v2462, %v2397
    %v2464 = vrot.slane %v2463, 4
    %v2465 = vadd.f32 %v2463, %v2464
    %v2466 = vrot.slane %v2465, 2
    %v2467 = vadd.f32 %v2465, %v2466
    %v2468 = vrot.slane %v2467, 1
    %v2469 = vadd.f32 %v2467, %v2468
    %v2470 = vadd.f32 %v2198, %v2406
    %v2471 = vadd.f32 %v2199, %v2415
    %v2472 = vadd.f32 %v2200, %v2424
    %v2473 = vadd.f32 %v2201, %v2433
    %v2474 = vadd.f32 %v2202, %v2442
    %v2475 = vadd.f32 %v2203, %v2451
    %v2476 = vadd.f32 %v2204, %v2460
    %v2477 = vadd.f32 %v2205, %v2469
    %v2478 = vld [vmem:[#allocation7 + $0x40] sm:$0xff]
    %v2479 = vld [vmem:[#allocation7 + $0x48] sm:$0xff]
    %v2480 = vld [vmem:[#allocation7 + $0x50] sm:$0xff]
    %v2481 = vld [vmem:[#allocation7 + $0x58] sm:$0xff]
    %v2482 = vld [vmem:[#allocation7 + $0xc0] sm:$0xff]
    %v2483 = vld [vmem:[#allocation7 + $0xc8] sm:$0xff]
    %v2484 = vld [vmem:[#allocation7 + $0xd0] sm:$0xff]
    %v2485 = vld [vmem:[#allocation7 + $0xd8] sm:$0xff]
    %v2486 = vld [vmem:[#allocation7 + $0x140] sm:$0xff]
    %v2487 = vld [vmem:[#allocation7 + $0x148] sm:$0xff]
    %v2488 = vld [vmem:[#allocation7 + $0x150] sm:$0xff]
    %v2489 = vld [vmem:[#allocation7 + $0x158] sm:$0xff]
    %v2490 = vld [vmem:[#allocation7 + $0x1c0] sm:$0xff]
    %v2491 = vld [vmem:[#allocation7 + $0x1c8] sm:$0xff]
    %v2492 = vld [vmem:[#allocation7 + $0x1d0] sm:$0xff]
    %v2493 = vld [vmem:[#allocation7 + $0x1d8] sm:$0xff]
    %v2494 = vld [vmem:[#allocation7 + $0x240] sm:$0xff]
    %v2495 = vld [vmem:[#allocation7 + $0x248] sm:$0xff]
    %v2496 = vld [vmem:[#allocation7 + $0x250] sm:$0xff]
    %v2497 = vld [vmem:[#allocation7 + $0x258] sm:$0xff]
    %v2498 = vld [vmem:[#allocation7 + $0x2c0] sm:$0xff]
    %v2499 = vld [vmem:[#allocation7 + $0x2c8] sm:$0xff]
    %v2500 = vld [vmem:[#allocation7 + $0x2d0] sm:$0xff]
    %v2501 = vld [vmem:[#allocation7 + $0x2d8] sm:$0xff]
    %v2502 = vld [vmem:[#allocation7 + $0x340] sm:$0xff]
    %v2503 = vld [vmem:[#allocation7 + $0x348] sm:$0xff]
    %v2504 = vld [vmem:[#allocation7 + $0x350] sm:$0xff]
    %v2505 = vld [vmem:[#allocation7 + $0x358] sm:$0xff]
    %v2506 = vld [vmem:[#allocation7 + $0x3c0] sm:$0xff]
    %v2507 = vld [vmem:[#allocation7 + $0x3c8] sm:$0xff]
    %v2508 = vld [vmem:[#allocation7 + $0x3d0] sm:$0xff]
    %v2509 = vld [vmem:[#allocation7 + $0x3d8] sm:$0xff]
    %s2511 = sor.u32 256, 64
    %2512 = vbcast.lane.b32.xlu0 %v1945, %s2511
    %v2513 = vpop.permute.xlu0 %2512
    %s2515 = sor.u32 256, 72
    %2516 = vbcast.lane.b32.xlu0 %v1945, %s2515
    %v2517 = vpop.permute.xlu0 %2516
    %s2519 = sor.u32 256, 80
    %2520 = vbcast.lane.b32.xlu0 %v1945, %s2519
    %v2521 = vpop.permute.xlu0 %2520
    %s2523 = sor.u32 256, 88
    %2524 = vbcast.lane.b32.xlu0 %v1945, %s2523
    %v2525 = vpop.permute.xlu0 %2524
    %s2527 = sor.u32 256, 64
    %2528 = vbcast.lane.b32.xlu0 %v1964, %s2527
    %v2529 = vpop.permute.xlu0 %2528
    %s2531 = sor.u32 256, 72
    %2532 = vbcast.lane.b32.xlu0 %v1964, %s2531
    %v2533 = vpop.permute.xlu0 %2532
    %s2535 = sor.u32 256, 80
    %2536 = vbcast.lane.b32.xlu0 %v1964, %s2535
    %v2537 = vpop.permute.xlu0 %2536
    %s2539 = sor.u32 256, 88
    %2540 = vbcast.lane.b32.xlu0 %v1964, %s2539
    %v2541 = vpop.permute.xlu0 %2540
    %s2543 = sor.u32 256, 64
    %2544 = vbcast.lane.b32.xlu0 %v1983, %s2543
    %v2545 = vpop.permute.xlu0 %2544
    %s2547 = sor.u32 256, 72
    %2548 = vbcast.lane.b32.xlu0 %v1983, %s2547
    %v2549 = vpop.permute.xlu0 %2548
    %s2551 = sor.u32 256, 80
    %2552 = vbcast.lane.b32.xlu0 %v1983, %s2551
    %v2553 = vpop.permute.xlu0 %2552
    %s2555 = sor.u32 256, 88
    %2556 = vbcast.lane.b32.xlu0 %v1983, %s2555
    %v2557 = vpop.permute.xlu0 %2556
    %s2559 = sor.u32 256, 64
    %2560 = vbcast.lane.b32.xlu0 %v2002, %s2559
    %v2561 = vpop.permute.xlu0 %2560
    %s2563 = sor.u32 256, 72
    %2564 = vbcast.lane.b32.xlu0 %v2002, %s2563
    %v2565 = vpop.permute.xlu0 %2564
    %s2567 = sor.u32 256, 80
    %2568 = vbcast.lane.b32.xlu0 %v2002, %s2567
    %v2569 = vpop.permute.xlu0 %2568
    %s2571 = sor.u32 256, 88
    %2572 = vbcast.lane.b32.xlu0 %v2002, %s2571
    %v2573 = vpop.permute.xlu0 %2572
    %s2575 = sor.u32 256, 64
    %2576 = vbcast.lane.b32.xlu0 %v2021, %s2575
    %v2577 = vpop.permute.xlu0 %2576
    %s2579 = sor.u32 256, 72
    %2580 = vbcast.lane.b32.xlu0 %v2021, %s2579
    %v2581 = vpop.permute.xlu0 %2580
    %s2583 = sor.u32 256, 80
    %2584 = vbcast.lane.b32.xlu0 %v2021, %s2583
    %v2585 = vpop.permute.xlu0 %2584
    %s2587 = sor.u32 256, 88
    %2588 = vbcast.lane.b32.xlu0 %v2021, %s2587
    %v2589 = vpop.permute.xlu0 %2588
    %s2591 = sor.u32 256, 64
    %2592 = vbcast.lane.b32.xlu0 %v2040, %s2591
    %v2593 = vpop.permute.xlu0 %2592
    %s2595 = sor.u32 256, 72
    %2596 = vbcast.lane.b32.xlu0 %v2040, %s2595
    %v2597 = vpop.permute.xlu0 %2596
    %s2599 = sor.u32 256, 80
    %2600 = vbcast.lane.b32.xlu0 %v2040, %s2599
    %v2601 = vpop.permute.xlu0 %2600
    %s2603 = sor.u32 256, 88
    %2604 = vbcast.lane.b32.xlu0 %v2040, %s2603
    %v2605 = vpop.permute.xlu0 %2604
    %s2607 = sor.u32 256, 64
    %2608 = vbcast.lane.b32.xlu0 %v2059, %s2607
    %v2609 = vpop.permute.xlu0 %2608
    %s2611 = sor.u32 256, 72
    %2612 = vbcast.lane.b32.xlu0 %v2059, %s2611
    %v2613 = vpop.permute.xlu0 %2612
    %s2615 = sor.u32 256, 80
    %2616 = vbcast.lane.b32.xlu0 %v2059, %s2615
    %v2617 = vpop.permute.xlu0 %2616
    %s2619 = sor.u32 256, 88
    %2620 = vbcast.lane.b32.xlu0 %v2059, %s2619
    %v2621 = vpop.permute.xlu0 %2620
    %s2623 = sor.u32 256, 64
    %2624 = vbcast.lane.b32.xlu0 %v2078, %s2623
    %v2625 = vpop.permute.xlu0 %2624
    %s2627 = sor.u32 256, 72
    %2628 = vbcast.lane.b32.xlu0 %v2078, %s2627
    %v2629 = vpop.permute.xlu0 %2628
    %s2631 = sor.u32 256, 80
    %2632 = vbcast.lane.b32.xlu0 %v2078, %s2631
    %v2633 = vpop.permute.xlu0 %2632
    %s2635 = sor.u32 256, 88
    %2636 = vbcast.lane.b32.xlu0 %v2078, %s2635
    %v2637 = vpop.permute.xlu0 %2636
    %v2638 = vmul.f32 %v2513, %v2478
    %v2639 = vmul.f32 %v2517, %v2479
    %v2640 = vmul.f32 %v2521, %v2480
    %v2641 = vmul.f32 %v2525, %v2481
    %v2642 = vmul.f32 %v2529, %v2482
    %v2643 = vmul.f32 %v2533, %v2483
    %v2644 = vmul.f32 %v2537, %v2484
    %v2645 = vmul.f32 %v2541, %v2485
    %v2646 = vmul.f32 %v2545, %v2486
    %v2647 = vmul.f32 %v2549, %v2487
    %v2648 = vmul.f32 %v2553, %v2488
    %v2649 = vmul.f32 %v2557, %v2489
    %v2650 = vmul.f32 %v2561, %v2490
    %v2651 = vmul.f32 %v2565, %v2491
    %v2652 = vmul.f32 %v2569, %v2492
    %v2653 = vmul.f32 %v2573, %v2493
    %v2654 = vmul.f32 %v2577, %v2494
    %v2655 = vmul.f32 %v2581, %v2495
    %v2656 = vmul.f32 %v2585, %v2496
    %v2657 = vmul.f32 %v2589, %v2497
    %v2658 = vmul.f32 %v2593, %v2498
    %v2659 = vmul.f32 %v2597, %v2499
    %v2660 = vmul.f32 %v2601, %v2500
    %v2661 = vmul.f32 %v2605, %v2501
    %v2662 = vmul.f32 %v2609, %v2502
    %v2663 = vmul.f32 %v2613, %v2503
    %v2664 = vmul.f32 %v2617, %v2504
    %v2665 = vmul.f32 %v2621, %v2505
    %v2666 = vmul.f32 %v2625, %v2506
    %v2667 = vmul.f32 %v2629, %v2507
    %v2668 = vmul.f32 %v2633, %v2508
    %v2669 = vmul.f32 %v2637, %v2509
    %v2670 = vadd.f32 %v2638, %v2639
    %v2671 = vadd.f32 %v2670, %v2640
    %v2672 = vadd.f32 %v2671, %v2641
    %v2673 = vrot.slane %v2672, 4
    %v2674 = vadd.f32 %v2672, %v2673
    %v2675 = vrot.slane %v2674, 2
    %v2676 = vadd.f32 %v2674, %v2675
    %v2677 = vrot.slane %v2676, 1
    %v2678 = vadd.f32 %v2676, %v2677
    %v2679 = vadd.f32 %v2642, %v2643
    %v2680 = vadd.f32 %v2679, %v2644
    %v2681 = vadd.f32 %v2680, %v2645
    %v2682 = vrot.slane %v2681, 4
    %v2683 = vadd.f32 %v2681, %v2682
    %v2684 = vrot.slane %v2683, 2
    %v2685 = vadd.f32 %v2683, %v2684
    %v2686 = vrot.slane %v2685, 1
    %v2687 = vadd.f32 %v2685, %v2686
    %v2688 = vadd.f32 %v2646, %v2647
    %v2689 = vadd.f32 %v2688, %v2648
    %v2690 = vadd.f32 %v2689, %v2649
    %v2691 = vrot.slane %v2690, 4
    %v2692 = vadd.f32 %v2690, %v2691
    %v2693 = vrot.slane %v2692, 2
    %v2694 = vadd.f32 %v2692, %v2693
    %v2695 = vrot.slane %v2694, 1
    %v2696 = vadd.f32 %v2694, %v2695
    %v2697 = vadd.f32 %v2650, %v2651
    %v2698 = vadd.f32 %v2697, %v2652
    %v2699 = vadd.f32 %v2698, %v2653
    %v2700 = vrot.slane %v2699, 4
    %v2701 = vadd.f32 %v2699, %v2700
    %v2702 = vrot.slane %v2701, 2
    %v2703 = vadd.f32 %v2701, %v2702
    %v2704 = vrot.slane %v2703, 1
    %v2705 = vadd.f32 %v2703, %v2704
    %v2706 = vadd.f32 %v2654, %v2655
    %v2707 = vadd.f32 %v2706, %v2656
    %v2708 = vadd.f32 %v2707, %v2657
    %v2709 = vrot.slane %v2708, 4
    %v2710 = vadd.f32 %v2708, %v2709
    %v2711 = vrot.slane %v2710, 2
    %v2712 = vadd.f32 %v2710, %v2711
    %v2713 = vrot.slane %v2712, 1
    %v2714 = vadd.f32 %v2712, %v2713
    %v2715 = vadd.f32 %v2658, %v2659
    %v2716 = vadd.f32 %v2715, %v2660
    %v2717 = vadd.f32 %v2716, %v2661
    %v2718 = vrot.slane %v2717, 4
    %v2719 = vadd.f32 %v2717, %v2718
    %v2720 = vrot.slane %v2719, 2
    %v2721 = vadd.f32 %v2719, %v2720
    %v2722 = vrot.slane %v2721, 1
    %v2723 = vadd.f32 %v2721, %v2722
    %v2724 = vadd.f32 %v2662, %v2663
    %v2725 = vadd.f32 %v2724, %v2664
    %v2726 = vadd.f32 %v2725, %v2665
    %v2727 = vrot.slane %v2726, 4
    %v2728 = vadd.f32 %v2726, %v2727
    %v2729 = vrot.slane %v2728, 2
    %v2730 = vadd.f32 %v2728, %v2729
    %v2731 = vrot.slane %v2730, 1
    %v2732 = vadd.f32 %v2730, %v2731
    %v2733 = vadd.f32 %v2666, %v2667
    %v2734 = vadd.f32 %v2733, %v2668
    %v2735 = vadd.f32 %v2734, %v2669
    %v2736 = vrot.slane %v2735, 4
    %v2737 = vadd.f32 %v2735, %v2736
    %v2738 = vrot.slane %v2737, 2
    %v2739 = vadd.f32 %v2737, %v2738
    %v2740 = vrot.slane %v2739, 1
    %v2741 = vadd.f32 %v2739, %v2740
    %v2742 = vadd.f32 %v2470, %v2678
    %v2743 = vadd.f32 %v2471, %v2687
    %v2744 = vadd.f32 %v2472, %v2696
    %v2745 = vadd.f32 %v2473, %v2705
    %v2746 = vadd.f32 %v2474, %v2714
    %v2747 = vadd.f32 %v2475, %v2723
    %v2748 = vadd.f32 %v2476, %v2732
    %v2749 = vadd.f32 %v2477, %v2741
    %v2750 = vld [vmem:[#allocation7 + $0x60] sm:$0xff]
    %v2751 = vld [vmem:[#allocation7 + $0x68] sm:$0xff]
    %v2752 = vld [vmem:[#allocation7 + $0x70] sm:$0xff]
    %v2753 = vld [vmem:[#allocation7 + $0x78] sm:$0xff]
    %v2754 = vld [vmem:[#allocation7 + $0xe0] sm:$0xff]
    %v2755 = vld [vmem:[#allocation7 + $0xe8] sm:$0xff]
    %v2756 = vld [vmem:[#allocation7 + $0xf0] sm:$0xff]
    %v2757 = vld [vmem:[#allocation7 + $0xf8] sm:$0xff]
    %v2758 = vld [vmem:[#allocation7 + $0x160] sm:$0xff]
    %v2759 = vld [vmem:[#allocation7 + $0x168] sm:$0xff]
    %v2760 = vld [vmem:[#allocation7 + $0x170] sm:$0xff]
    %v2761 = vld [vmem:[#allocation7 + $0x178] sm:$0xff]
    %v2762 = vld [vmem:[#allocation7 + $0x1e0] sm:$0xff]
    %v2763 = vld [vmem:[#allocation7 + $0x1e8] sm:$0xff]
    %v2764 = vld [vmem:[#allocation7 + $0x1f0] sm:$0xff]
    %v2765 = vld [vmem:[#allocation7 + $0x1f8] sm:$0xff]
    %v2766 = vld [vmem:[#allocation7 + $0x260] sm:$0xff]
    %v2767 = vld [vmem:[#allocation7 + $0x268] sm:$0xff]
    %v2768 = vld [vmem:[#allocation7 + $0x270] sm:$0xff]
    %v2769 = vld [vmem:[#allocation7 + $0x278] sm:$0xff]
    %v2770 = vld [vmem:[#allocation7 + $0x2e0] sm:$0xff]
    %v2771 = vld [vmem:[#allocation7 + $0x2e8] sm:$0xff]
    %v2772 = vld [vmem:[#allocation7 + $0x2f0] sm:$0xff]
    %v2773 = vld [vmem:[#allocation7 + $0x2f8] sm:$0xff]
    %v2774 = vld [vmem:[#allocation7 + $0x360] sm:$0xff]
    %v2775 = vld [vmem:[#allocation7 + $0x368] sm:$0xff]
    %v2776 = vld [vmem:[#allocation7 + $0x370] sm:$0xff]
    %v2777 = vld [vmem:[#allocation7 + $0x378] sm:$0xff]
    %v2778 = vld [vmem:[#allocation7 + $0x3e0] sm:$0xff]
    %v2779 = vld [vmem:[#allocation7 + $0x3e8] sm:$0xff]
    %v2780 = vld [vmem:[#allocation7 + $0x3f0] sm:$0xff]
    %v2781 = vld [vmem:[#allocation7 + $0x3f8] sm:$0xff]
    %s2783 = sor.u32 256, 96
    %2784 = vbcast.lane.b32.xlu0 %v1945, %s2783
    %v2785 = vpop.permute.xlu0 %2784
    %s2787 = sor.u32 256, 104
    %2788 = vbcast.lane.b32.xlu0 %v1945, %s2787
    %v2789 = vpop.permute.xlu0 %2788
    %s2791 = sor.u32 256, 112
    %2792 = vbcast.lane.b32.xlu0 %v1945, %s2791
    %v2793 = vpop.permute.xlu0 %2792
    %s2795 = sor.u32 256, 120
    %2796 = vbcast.lane.b32.xlu0 %v1945, %s2795
    %v2797 = vpop.permute.xlu0 %2796
    %s2799 = sor.u32 256, 96
    %2800 = vbcast.lane.b32.xlu0 %v1964, %s2799
    %v2801 = vpop.permute.xlu0 %2800
    %s2803 = sor.u32 256, 104
    %2804 = vbcast.lane.b32.xlu0 %v1964, %s2803
    %v2805 = vpop.permute.xlu0 %2804
    %s2807 = sor.u32 256, 112
    %2808 = vbcast.lane.b32.xlu0 %v1964, %s2807
    %v2809 = vpop.permute.xlu0 %2808
    %s2811 = sor.u32 256, 120
    %2812 = vbcast.lane.b32.xlu0 %v1964, %s2811
    %v2813 = vpop.permute.xlu0 %2812
    %s2815 = sor.u32 256, 96
    %2816 = vbcast.lane.b32.xlu0 %v1983, %s2815
    %v2817 = vpop.permute.xlu0 %2816
    %s2819 = sor.u32 256, 104
    %2820 = vbcast.lane.b32.xlu0 %v1983, %s2819
    %v2821 = vpop.permute.xlu0 %2820
    %s2823 = sor.u32 256, 112
    %2824 = vbcast.lane.b32.xlu0 %v1983, %s2823
    %v2825 = vpop.permute.xlu0 %2824
    %s2827 = sor.u32 256, 120
    %2828 = vbcast.lane.b32.xlu0 %v1983, %s2827
    %v2829 = vpop.permute.xlu0 %2828
    %s2831 = sor.u32 256, 96
    %2832 = vbcast.lane.b32.xlu0 %v2002, %s2831
    %v2833 = vpop.permute.xlu0 %2832
    %s2835 = sor.u32 256, 104
    %2836 = vbcast.lane.b32.xlu0 %v2002, %s2835
    %v2837 = vpop.permute.xlu0 %2836
    %s2839 = sor.u32 256, 112
    %2840 = vbcast.lane.b32.xlu0 %v2002, %s2839
    %v2841 = vpop.permute.xlu0 %2840
    %s2843 = sor.u32 256, 120
    %2844 = vbcast.lane.b32.xlu0 %v2002, %s2843
    %v2845 = vpop.permute.xlu0 %2844
    %s2847 = sor.u32 256, 96
    %2848 = vbcast.lane.b32.xlu0 %v2021, %s2847
    %v2849 = vpop.permute.xlu0 %2848
    %s2851 = sor.u32 256, 104
    %2852 = vbcast.lane.b32.xlu0 %v2021, %s2851
    %v2853 = vpop.permute.xlu0 %2852
    %s2855 = sor.u32 256, 112
    %2856 = vbcast.lane.b32.xlu0 %v2021, %s2855
    %v2857 = vpop.permute.xlu0 %2856
    %s2859 = sor.u32 256, 120
    %2860 = vbcast.lane.b32.xlu0 %v2021, %s2859
    %v2861 = vpop.permute.xlu0 %2860
    %s2863 = sor.u32 256, 96
    %2864 = vbcast.lane.b32.xlu0 %v2040, %s2863
    %v2865 = vpop.permute.xlu0 %2864
    %s2867 = sor.u32 256, 104
    %2868 = vbcast.lane.b32.xlu0 %v2040, %s2867
    %v2869 = vpop.permute.xlu0 %2868
    %s2871 = sor.u32 256, 112
    %2872 = vbcast.lane.b32.xlu0 %v2040, %s2871
    %v2873 = vpop.permute.xlu0 %2872
    %s2875 = sor.u32 256, 120
    %2876 = vbcast.lane.b32.xlu0 %v2040, %s2875
    %v2877 = vpop.permute.xlu0 %2876
    %s2879 = sor.u32 256, 96
    %2880 = vbcast.lane.b32.xlu0 %v2059, %s2879
    %v2881 = vpop.permute.xlu0 %2880
    %s2883 = sor.u32 256, 104
    %2884 = vbcast.lane.b32.xlu0 %v2059, %s2883
    %v2885 = vpop.permute.xlu0 %2884
    %s2887 = sor.u32 256, 112
    %2888 = vbcast.lane.b32.xlu0 %v2059, %s2887
    %v2889 = vpop.permute.xlu0 %2888
    %s2891 = sor.u32 256, 120
    %2892 = vbcast.lane.b32.xlu0 %v2059, %s2891
    %v2893 = vpop.permute.xlu0 %2892
    %s2895 = sor.u32 256, 96
    %2896 = vbcast.lane.b32.xlu0 %v2078, %s2895
    %v2897 = vpop.permute.xlu0 %2896
    %s2899 = sor.u32 256, 104
    %2900 = vbcast.lane.b32.xlu0 %v2078, %s2899
    %v2901 = vpop.permute.xlu0 %2900
    %s2903 = sor.u32 256, 112
    %2904 = vbcast.lane.b32.xlu0 %v2078, %s2903
    %v2905 = vpop.permute.xlu0 %2904
    %s2907 = sor.u32 256, 120
    %2908 = vbcast.lane.b32.xlu0 %v2078, %s2907
    %v2909 = vpop.permute.xlu0 %2908
    %v2910 = vmul.f32 %v2785, %v2750
    %v2911 = vmul.f32 %v2789, %v2751
    %v2912 = vmul.f32 %v2793, %v2752
    %v2913 = vmul.f32 %v2797, %v2753
    %v2914 = vmul.f32 %v2801, %v2754
    %v2915 = vmul.f32 %v2805, %v2755
    %v2916 = vmul.f32 %v2809, %v2756
    %v2917 = vmul.f32 %v2813, %v2757
    %v2918 = vmul.f32 %v2817, %v2758
    %v2919 = vmul.f32 %v2821, %v2759
    %v2920 = vmul.f32 %v2825, %v2760
    %v2921 = vmul.f32 %v2829, %v2761
    %v2922 = vmul.f32 %v2833, %v2762
    %v2923 = vmul.f32 %v2837, %v2763
    %v2924 = vmul.f32 %v2841, %v2764
    %v2925 = vmul.f32 %v2845, %v2765
    %v2926 = vmul.f32 %v2849, %v2766
    %v2927 = vmul.f32 %v2853, %v2767
    %v2928 = vmul.f32 %v2857, %v2768
    %v2929 = vmul.f32 %v2861, %v2769
    %v2930 = vmul.f32 %v2865, %v2770
    %v2931 = vmul.f32 %v2869, %v2771
    %v2932 = vmul.f32 %v2873, %v2772
    %v2933 = vmul.f32 %v2877, %v2773
    %v2934 = vmul.f32 %v2881, %v2774
    %v2935 = vmul.f32 %v2885, %v2775
    %v2936 = vmul.f32 %v2889, %v2776
    %v2937 = vmul.f32 %v2893, %v2777
    %v2938 = vmul.f32 %v2897, %v2778
    %v2939 = vmul.f32 %v2901, %v2779
    %v2940 = vmul.f32 %v2905, %v2780
    %v2941 = vmul.f32 %v2909, %v2781
    %v2942 = vadd.f32 %v2910, %v2911
    %v2943 = vadd.f32 %v2942, %v2912
    %v2944 = vadd.f32 %v2943, %v2913
    %v2945 = vrot.slane %v2944, 4
    %v2946 = vadd.f32 %v2944, %v2945
    %v2947 = vrot.slane %v2946, 2
    %v2948 = vadd.f32 %v2946, %v2947
    %v2949 = vrot.slane %v2948, 1
    %v2950 = vadd.f32 %v2948, %v2949
    %v2951 = vadd.f32 %v2914, %v2915
    %v2952 = vadd.f32 %v2951, %v2916
    %v2953 = vadd.f32 %v2952, %v2917
    %v2954 = vrot.slane %v2953, 4
    %v2955 = vadd.f32 %v2953, %v2954
    %v2956 = vrot.slane %v2955, 2
    %v2957 = vadd.f32 %v2955, %v2956
    %v2958 = vrot.slane %v2957, 1
    %v2959 = vadd.f32 %v2957, %v2958
    %v2960 = vadd.f32 %v2918, %v2919
    %v2961 = vadd.f32 %v2960, %v2920
    %v2962 = vadd.f32 %v2961, %v2921
    %v2963 = vrot.slane %v2962, 4
    %v2964 = vadd.f32 %v2962, %v2963
    %v2965 = vrot.slane %v2964, 2
    %v2966 = vadd.f32 %v2964, %v2965
    %v2967 = vrot.slane %v2966, 1
    %v2968 = vadd.f32 %v2966, %v2967
    %v2969 = vadd.f32 %v2922, %v2923
    %v2970 = vadd.f32 %v2969, %v2924
    %v2971 = vadd.f32 %v2970, %v2925
    %v2972 = vrot.slane %v2971, 4
    %v2973 = vadd.f32 %v2971, %v2972
    %v2974 = vrot.slane %v2973, 2
    %v2975 = vadd.f32 %v2973, %v2974
    %v2976 = vrot.slane %v2975, 1
    %v2977 = vadd.f32 %v2975, %v2976
    %v2978 = vadd.f32 %v2926, %v2927
    %v2979 = vadd.f32 %v2978, %v2928
    %v2980 = vadd.f32 %v2979, %v2929
    %v2981 = vrot.slane %v2980, 4
    %v2982 = vadd.f32 %v2980, %v2981
    %v2983 = vrot.slane %v2982, 2
    %v2984 = vadd.f32 %v2982, %v2983
    %v2985 = vrot.slane %v2984, 1
    %v2986 = vadd.f32 %v2984, %v2985
    %v2987 = vadd.f32 %v2930, %v2931
    %v2988 = vadd.f32 %v2987, %v2932
    %v2989 = vadd.f32 %v2988, %v2933
    %v2990 = vrot.slane %v2989, 4
    %v2991 = vadd.f32 %v2989, %v2990
    %v2992 = vrot.slane %v2991, 2
    %v2993 = vadd.f32 %v2991, %v2992
    %v2994 = vrot.slane %v2993, 1
    %v2995 = vadd.f32 %v2993, %v2994
    %v2996 = vadd.f32 %v2934, %v2935
    %v2997 = vadd.f32 %v2996, %v2936
    %v2998 = vadd.f32 %v2997, %v2937
    %v2999 = vrot.slane %v2998, 4
    %v3000 = vadd.f32 %v2998, %v2999
    %v3001 = vrot.slane %v3000, 2
    %v3002 = vadd.f32 %v3000, %v3001
    %v3003 = vrot.slane %v3002, 1
    %v3004 = vadd.f32 %v3002, %v3003
    %v3005 = vadd.f32 %v2938, %v2939
    %v3006 = vadd.f32 %v3005, %v2940
    %v3007 = vadd.f32 %v3006, %v2941
    %v3008 = vrot.slane %v3007, 4
    %v3009 = vadd.f32 %v3007, %v3008
    %v3010 = vrot.slane %v3009, 2
    %v3011 = vadd.f32 %v3009, %v3010
    %v3012 = vrot.slane %v3011, 1
    %v3013 = vadd.f32 %v3011, %v3012
    %v3014 = vadd.f32 %v2742, %v2950
    %v3015 = vadd.f32 %v2743, %v2959
    %v3016 = vadd.f32 %v2744, %v2968
    %v3017 = vadd.f32 %v2745, %v2977
    %v3018 = vadd.f32 %v2746, %v2986
    %v3019 = vadd.f32 %v2747, %v2995
    %v3020 = vadd.f32 %v2748, %v3004
    %v3021 = vadd.f32 %v2749, %v3013
    %v3022 = vld [vmem:[#allocation4] sm:$0xff]
    %3024 = vset.pattern.permute.xlu0 0
    %3025 = vperm.xlu0 %3024, %v1891
    %v3026 = vpop.permute.xlu0 %3025
    %v3028 = vmul.f32 %v3026, %v3022
    %v3037 = vsel %vm506, %v3015, %v3014
    %v3038 = vsel %vm508, %v3016, %v3037
    %v3039 = vsel %vm510, %v3017, %v3038
    %v3040 = vsel %vm512, %v3018, %v3039
    %v3041 = vsel %vm514, %v3019, %v3040
    %v3042 = vsel %vm516, %v3020, %v3041
    %v3043 = vsel %vm518, %v3021, %v3042
    %v3045 = vadd.f32 %v3028, %v3043
    %3046 = vst [vmem:[#allocation4] sm:$0xff] %v3045
    // Predicated region
    $region30: #{tpu_custom_call.1} parent=1 // pred_check
      %p3047 = pneg %p55
    $region31: #{tpu_custom_call.1} parent=1 // pred_check_branch
      %3049 = sbr.rel (%p3047) target = $region33
    $region32: #{tpu_custom_call.1} parent=1 // pred_region
      %v3050 = vld [vmem:[#allocation3] sm:$0xff]
      %v3051 = vrcp.pop %v3050
      %v3052 = vld [vmem:[#allocation4] sm:$0xff]
      %3054 = vset.pattern.permute.xlu0 0
      %3055 = vperm.xlu0 %3054, %v3051
      %v3056 = vpop.permute.xlu0 %3055
      %v3058 = vmul.f32 %v3052, %v3056
      %3059 = vst [vmem:[#allocation13] sm:$0xff] %v3058
      %v3060 = vld [vmem:[#allocation2] sm:$0xff]
      %v3061 = vld [vmem:[#allocation6] sm:$0xff]
      %3063 = vset.pattern.permute.xlu0 0
      %3064 = vperm.xlu0 %3063, %v3060
      %v3065 = vpop.permute.xlu0 %3064
      %v3067 = vsub.f32 %v3061, %v3065
      %v3068 = vmul.f32 %v3067, 1.442695
      %v3069 = vpow.pop %v3068
      %v3070 = vmul.f32 %v3069, %v3056
      %3071 = vst [vmem:[#allocation14] sm:$0xff] %v3070
    $region33: #{tpu_custom_call.1} parent=1 // pred_fallthru
      _
    // Predicated region
    $region34: #{tpu_custom_call.1} parent=1 // pred_check
      _
    $region35: #{tpu_custom_call.1} parent=1 // pred_check_branch
      %3073 = sbr.rel (0) target = $region37
    $region36: #{tpu_custom_call.1} parent=1 // pred_region
      %s3075 = ssub.s32 128, 128
      %3076 = vsyncadd [#allocation9], %s3075
      %s3078 = sshll.u32 [#allocation13], 4
      %s3079 = int_to_ptr.vmem [resolvable:$true] %s3078
      %3081 = dma.vmem_to_hbm [thread:$0]  %s3079, 128, %s3, [#allocation9]
    $region37: #{tpu_custom_call.1} parent=1 // pred_fallthru
      _
    // Predicated region
    $region38: #{tpu_custom_call.1} parent=1 // pred_check
      _
    $region39: #{tpu_custom_call.1} parent=1 // pred_check_branch
      %3083 = sbr.rel (0) target = $region41
    $region40: #{tpu_custom_call.1} parent=1 // pred_region
      %s3085 = ssub.s32 128, 128
      %3086 = vsyncadd [#allocation15], %s3085
      %s3088 = sshll.u32 [#allocation14], 4
      %s3089 = int_to_ptr.vmem [resolvable:$true] %s3088
      %3091 = dma.vmem_to_hbm [thread:$0]  %s3089, 128, %s4, [#allocation15]
    $region41: #{tpu_custom_call.1} parent=1 // pred_fallthru
      _
    // Predicated region
    $region42: #{tpu_custom_call.1} parent=1 // pred_check
      _
    $region43: #{tpu_custom_call.1} parent=1 // pred_check_branch
      %3093 = sbr.rel (0) target = $region45
    $region44: #{tpu_custom_call.1} parent=1 // pred_region
      %3094 = dma.done [#allocation9], 128
    $region45: #{tpu_custom_call.1} parent=1 // pred_fallthru
      _
    // Predicated region
    $region46: #{tpu_custom_call.1} parent=1 // pred_check
      _
    $region47: #{tpu_custom_call.1} parent=1 // pred_check_branch
      %3096 = sbr.rel (0) target = $region49
    $region48: #{tpu_custom_call.1} parent=1 // pred_region
      %3097 = dma.done [#allocation15], 128
    $region49: #{tpu_custom_call.1} parent=1 // pred_fallthru
      _
    %3098 = vsyncpa [#allocation8], 1
    %3099 = vsyncpa [#allocation11], 1
    %3100 = vsyncpa [#allocation9], 1
    %3101 = vsyncpa [#allocation15], 1

</llo_original>
